<compile_context>
chip_gen: v7x
topology: tpu7x:2x2x1
jax: 0.10.0
libtpu: 0.0.40
codegen_flags: <defaults>
</compile_context>

<pallas_src>
import jax
import jax.numpy as jnp
import numpy as np
from jax.experimental import pallas as pl
from jax.experimental.pallas import tpu as pltpu


def _cdiv(a, b):
    return (a + b - 1) // b


def _round_up(x, m):
    return _cdiv(x, m) * m


def _fourier_kernel(x_ref, a_ref, b_ref, w3_ref, bsrc_ref, wo_ref, bo_ref, out_ref):
    """One edge tile, fully lane-dense (G edges per row)."""
    f32 = jnp.float32
    x = x_ref[...]                                                   # [R, G*2D]

    # Lane expansion via two constant 0/1 block-diagonal matmuls (MXU, no shuffles):
    #   src_rep[r, G-block j, d*D+d'] = h_src[e,d],  i_til[..] = h_i[e,d']
    src_rep = jnp.dot(x, a_ref[...], preferred_element_type=f32)     # [R, G*D*D]
    i_til = jnp.dot(x, b_ref[...], preferred_element_type=f32)       # [R, G*D*D]
    outer = src_rep * i_til                                          # VPU, dense

    # proj = bilinear term + freq-generator bias term, lane-dense [R, G*F].
    proj = jnp.dot(outer, w3_ref[...], preferred_element_type=f32)
    proj = proj + jnp.dot(x, bsrc_ref[...], preferred_element_type=f32)

    # Trig epilogue fully lane-dense: 2 EUP transcendentals, rest is VPU double-angle.
    s1 = jnp.sin(proj)
    c1 = jnp.cos(proj)
    s2 = 2.0 * s1 * c1
    c2 = 1.0 - 2.0 * s1 * s1
    s4 = 2.0 * s2 * c2
    c4 = 1.0 - 2.0 * s2 * s2

    # out_proj: six accumulating block-diagonal matmuls; single f32 accumulator chain
    # (MRB in-place accumulate on v7x).  Result is already in the [R, G*F] store layout.
    acc = jnp.dot(s1, wo_ref[0], preferred_element_type=f32)
    acc = acc + jnp.dot(c1, wo_ref[1], preferred_element_type=f32)
    acc = acc + jnp.dot(s2, wo_ref[2], preferred_element_type=f32)
    acc = acc + jnp.dot(c2, wo_ref[3], preferred_element_type=f32)
    acc = acc + jnp.dot(s4, wo_ref[4], preferred_element_type=f32)
    acc = acc + jnp.dot(c4, wo_ref[5], preferred_element_type=f32)

    out_ref[...] = (acc + bo_ref[...]).astype(out_ref.dtype)


def fourier_base_dynamic(h_src, h_i, wf, bf, wo, bo, *, fourier_dim, tile_e=2048):
    """Pallas TPU implementation of FourierBaseDynamic.forward.

    h_src, h_i : [E, D] float32
    wf : [F*D, D] (torch nn.Linear weight layout),  bf : [F*D]
    wo : [F, 6F],  bo : [F]
    returns [E, F] float32
    """
    E, D = h_src.shape
    F = int(fourier_dim)
    assert h_i.shape == (E, D)
    assert wf.shape == (F * D, D) and bf.shape == (F * D,)
    assert wo.shape == (F, 6 * F) and bo.shape == (F,)
    f32 = jnp.float32

    # Edges packed per dense row: per-edge 2D / F segments fill 128 lanes when possible
    # (D=8, F=16 -> G=8 and every kernel tensor is exactly 128/512 lanes wide).
    G = max(1, 128 // max(2 * D, F))

    # --- tile sizing: rows multiple of 8, aim for >= 8 even grid steps (v7x 2 TCs). ---
    tile = min(int(tile_e), _round_up(_cdiv(E, 8), 8 * G))
    tile = max(8 * G, _round_up(tile, 8 * G))
    steps = _cdiv(E, tile)
    if steps > 1 and steps % 2:
        steps += 1                      # even step count -> balanced across v7x's 2 TCs
    e_pad = steps * tile
    rows = tile // G                    # sublane rows per grid step (multiple of 8)

    # --- pack [h_src | h_i] once; row-major reshape to lane-dense layout is free. -----
    hcat = jnp.concatenate([h_src.astype(f32), h_i.astype(f32)], axis=1)    # [E, 2D]
    if e_pad != E:
        hcat = jnp.pad(hcat, ((0, e_pad - E), (0, 0)))
    x_dense = hcat.reshape(e_pad // G, G * 2 * D)

    # --- constant 0/1 expansion matrices (block-diagonal over the G packed edges) -----
    a_blk = np.concatenate([np.repeat(np.eye(D, dtype=np.float32), D, axis=1),
                            np.zeros((D, D * D), np.float32)], axis=0)      # [2D, D*D]
    b_blk = np.concatenate([np.zeros((D, D * D), np.float32),
                            np.tile(np.eye(D, dtype=np.float32), (1, D))], axis=0)
    eye_g = np.eye(G, dtype=np.float32)
    a_bd = jnp.asarray(np.kron(eye_g, a_blk))                               # [G*2D, G*D*D]
    b_bd = jnp.asarray(np.kron(eye_g, b_blk))

    # --- parameter repackings: bilinear form + folded bias + block-diag out_proj ------
    eye_gj = jnp.asarray(eye_g)
    w3_blk = wf.astype(f32).reshape(F, D, D).transpose(1, 2, 0).reshape(D * D, F)
    w3_bd = jnp.kron(eye_gj, w3_blk)                                        # [G*D*D, G*F]
    bsrc_blk = jnp.concatenate([bf.astype(f32).reshape(F, D).T,
                                jnp.zeros((D, F), f32)], axis=0)            # [2D, F]
    bsrc_bd = jnp.kron(eye_gj, bsrc_blk)                                    # [G*2D, G*F]
    wo_blocks = wo.astype(f32).T.reshape(6, F, F)                           # [6, F, F]
    wo_bd = jnp.stack([jnp.kron(eye_gj, wo_blocks[t]) for t in range(6)])   # [6, G*F, G*F]
    bo_tiled = jnp.tile(bo.astype(f32), G).reshape(1, G * F)

    in_specs = [
        pl.BlockSpec((rows, G * 2 * D), lambda i: (i, 0)),        # packed [h_src|h_i] tile
        pl.BlockSpec((G * 2 * D, G * D * D), lambda i: (0, 0)),   # expansion A (resident)
        pl.BlockSpec((G * 2 * D, G * D * D), lambda i: (0, 0)),   # expansion B (resident)
        pl.BlockSpec((G * D * D, G * F), lambda i: (0, 0)),       # bilinear W3 (resident)
        pl.BlockSpec((G * 2 * D, G * F), lambda i: (0, 0)),       # folded freq bias (resident)
        pl.BlockSpec((6, G * F, G * F), lambda i: (0, 0, 0)),     # out_proj blocks (resident)
        pl.BlockSpec((1, G * F), lambda i: (0, 0)),               # out_proj bias
    ]
    out_specs = pl.BlockSpec((rows, G * F), lambda i: (i, 0))
    out_shape = jax.ShapeDtypeStruct((e_pad // G, G * F), f32)

    y = pl.pallas_call(
        _fourier_kernel,
        out_shape=out_shape,
        grid_spec=pltpu.PrefetchScalarGridSpec(
            num_scalar_prefetch=0,
            grid=(steps,),
            in_specs=in_specs,
            out_specs=out_specs,
        ),
        compiler_params=pltpu.CompilerParams(
            dimension_semantics=("parallel",)),
    )(x_dense, a_bd, b_bd, w3_bd, bsrc_bd, wo_bd, bo_tiled)

    # Free row-major un-packing back to [E, F].
    return y.reshape(e_pad, F)[:E]


def _reference(h_src, h_i, wf, bf, wo, bo, fourier_dim):
    """Plain-JAX reference mirroring the PyTorch forward (full-precision dots)."""
    B, D = h_src.shape
    F = fourier_dim
    freqs = (jnp.dot(h_i, wf.T, precision="highest") + bf).reshape(B, F, D)
    proj = jnp.einsum('bfd,bd->bf', freqs, h_src, precision="highest")
    emb = jnp.concatenate(
        [jnp.sin(proj), jnp.cos(proj),
         jnp.sin(2 * proj), jnp.cos(2 * proj),
         jnp.sin(4 * proj), jnp.cos(4 * proj)], axis=-1)
    return jnp.dot(emb, wo.T, precision="highest") + bo


if __name__ == "__main__":
    # Small deterministic problem; E deliberately NOT a multiple of the tile or of 8
    # so the padding path and a multi-step grid are exercised.
    E, D, F = 203, 8, 16

    key = jax.random.PRNGKey(0)
    k_src, k_i, k_wf, k_bf, k_wo, k_bo = jax.random.split(key, 6)

    h_src = jax.random.normal(k_src, (E, D), dtype=jnp.float32)
    h_i = jax.random.normal(k_i, (E, D), dtype=jnp.float32)
    wf = jax.random.normal(k_wf, (F * D, D), dtype=jnp.float32) * 0.1
    bf = jax.random.normal(k_bf, (F * D,), dtype=jnp.float32) * 0.1
    wo = jax.random.normal(k_wo, (F, 6 * F), dtype=jnp.float32) * 0.1
    bo = jax.random.normal(k_bo, (F,), dtype=jnp.float32) * 0.1
    # TODO(synk): phase_generator Linear(D, F) is defined in the PyTorch __init__ but
    # never used in forward(), so it is intentionally omitted.

    ref = _reference(h_src, h_i, wf, bf, wo, bo, F)

    out = fourier_base_dynamic(h_src, h_i, wf, bf, wo, bo, fourier_dim=F)
    out = jax.block_until_ready(out)
    assert out.shape == (E, F)
    err = float(jnp.max(jnp.abs(out - ref)))
    # Tolerance covers MXU f32 matmul reassociation + double-angle identities vs. the
    # XLA reference; structural bugs would be O(0.1) or larger.
    assert jnp.allclose(out, ref, atol=2e-2, rtol=2e-2), f"max abs err {err}"

    print("KERNEL_OK")
</pallas_src>

<mosaic_0001>
module attributes {stable_mosaic.version = 11 : i64} {
  func.func @_fourier_kernel(%arg0: i32, %arg1: memref<8x128xf32, #tpu.memory_space<vmem>>, %arg2: memref<128x512xf32, #tpu.memory_space<vmem>>, %arg3: memref<128x512xf32, #tpu.memory_space<vmem>>, %arg4: memref<512x128xf32, #tpu.memory_space<vmem>>, %arg5: memref<128x128xf32, #tpu.memory_space<vmem>>, %arg6: memref<6x128x128xf32, #tpu.memory_space<vmem>>, %arg7: memref<1x128xf32, #tpu.memory_space<vmem>>, %arg8: memref<8x128xf32, #tpu.memory_space<vmem>>) attributes {dimension_semantics = [#tpu.dimension_semantics<parallel>], iteration_bounds = array<i64: 4>, scalar_prefetch = 0 : i64, scratch_operands = 0 : i64, tpu.core_type = #tpu.core_type<tc>, window_params = [{transform_indices = @transform_0, window_bounds = array<i64: 8, 128>}, {pipeline_mode = #tpu.pipeline_mode<synchronous>, transform_indices = @transform_1, window_bounds = array<i64: 128, 512>}, {pipeline_mode = #tpu.pipeline_mode<synchronous>, transform_indices = @transform_2, window_bounds = array<i64: 128, 512>}, {pipeline_mode = #tpu.pipeline_mode<synchronous>, transform_indices = @transform_3, window_bounds = array<i64: 512, 128>}, {pipeline_mode = #tpu.pipeline_mode<synchronous>, transform_indices = @transform_4, window_bounds = array<i64: 128, 128>}, {pipeline_mode = #tpu.pipeline_mode<synchronous>, transform_indices = @transform_5, window_bounds = array<i64: 6, 128, 128>}, {pipeline_mode = #tpu.pipeline_mode<synchronous>, transform_indices = @transform_6, window_bounds = array<i64: 1, 128>}, {transform_indices = @transform_7, window_bounds = array<i64: 8, 128>}]} {
    %c0 = arith.constant 0 : index
    %c0_0 = arith.constant 0 : index
    %0 = vector.load %arg1[%c0, %c0_0] : memref<8x128xf32, #tpu.memory_space<vmem>>, vector<8x128xf32>
    %c0_1 = arith.constant 0 : index
    %c0_2 = arith.constant 0 : index
    %1 = vector.load %arg2[%c0_1, %c0_2] : memref<128x512xf32, #tpu.memory_space<vmem>>, vector<128x512xf32>
    %cst = arith.constant dense<0.000000e+00> : vector<8x512xf32>
    %2 = tpu.matmul %0, %1, %cst {dimension_numbers = #tpu.dot_dimension_numbers<[1], [0], [0], [1], [0, 0, 1, 1], [], []>} : vector<8x128xf32>, vector<128x512xf32>, vector<8x512xf32> -> vector<8x512xf32>
    %c0_3 = arith.constant 0 : index
    %c0_4 = arith.constant 0 : index
    %3 = vector.load %arg3[%c0_3, %c0_4] : memref<128x512xf32, #tpu.memory_space<vmem>>, vector<128x512xf32>
    %cst_5 = arith.constant dense<0.000000e+00> : vector<8x512xf32>
    %4 = tpu.matmul %0, %3, %cst_5 {dimension_numbers = #tpu.dot_dimension_numbers<[1], [0], [0], [1], [0, 0, 1, 1], [], []>} : vector<8x128xf32>, vector<128x512xf32>, vector<8x512xf32> -> vector<8x512xf32>
    %5 = arith.mulf %2, %4 : vector<8x512xf32>
    %c0_6 = arith.constant 0 : index
    %c0_7 = arith.constant 0 : index
    %6 = vector.load %arg4[%c0_6, %c0_7] : memref<512x128xf32, #tpu.memory_space<vmem>>, vector<512x128xf32>
    %cst_8 = arith.constant dense<0.000000e+00> : vector<8x128xf32>
    %7 = tpu.matmul %5, %6, %cst_8 {dimension_numbers = #tpu.dot_dimension_numbers<[1], [0], [0], [1], [0, 0, 1, 1], [], []>} : vector<8x512xf32>, vector<512x128xf32>, vector<8x128xf32> -> vector<8x128xf32>
    %c0_9 = arith.constant 0 : index
    %c0_10 = arith.constant 0 : index
    %8 = vector.load %arg5[%c0_9, %c0_10] : memref<128x128xf32, #tpu.memory_space<vmem>>, vector<128x128xf32>
    %cst_11 = arith.constant dense<0.000000e+00> : vector<8x128xf32>
    %9 = tpu.matmul %0, %8, %cst_11 {dimension_numbers = #tpu.dot_dimension_numbers<[1], [0], [0], [1], [0, 0, 1, 1], [], []>} : vector<8x128xf32>, vector<128x128xf32>, vector<8x128xf32> -> vector<8x128xf32>
    %10 = arith.addf %7, %9 : vector<8x128xf32>
    %11 = math.sin %10 : vector<8x128xf32>
    %12 = math.cos %10 : vector<8x128xf32>
    %cst_12 = arith.constant 2.000000e+00 : f32
    %13 = vector.broadcast %cst_12 : f32 to vector<8x128xf32>
    %14 = arith.mulf %13, %11 : vector<8x128xf32>
    %15 = arith.mulf %14, %12 : vector<8x128xf32>
    %cst_13 = arith.constant 2.000000e+00 : f32
    %16 = vector.broadcast %cst_13 : f32 to vector<8x128xf32>
    %17 = arith.mulf %16, %11 : vector<8x128xf32>
    %18 = arith.mulf %17, %11 : vector<8x128xf32>
    %cst_14 = arith.constant 1.000000e+00 : f32
    %19 = vector.broadcast %cst_14 : f32 to vector<8x128xf32>
    %20 = arith.subf %19, %18 : vector<8x128xf32>
    %cst_15 = arith.constant 2.000000e+00 : f32
    %21 = vector.broadcast %cst_15 : f32 to vector<8x128xf32>
    %22 = arith.mulf %21, %15 : vector<8x128xf32>
    %23 = arith.mulf %22, %20 : vector<8x128xf32>
    %cst_16 = arith.constant 2.000000e+00 : f32
    %24 = vector.broadcast %cst_16 : f32 to vector<8x128xf32>
    %25 = arith.mulf %24, %15 : vector<8x128xf32>
    %26 = arith.mulf %25, %15 : vector<8x128xf32>
    %cst_17 = arith.constant 1.000000e+00 : f32
    %27 = vector.broadcast %cst_17 : f32 to vector<8x128xf32>
    %28 = arith.subf %27, %26 : vector<8x128xf32>
    %c0_18 = arith.constant 0 : index
    %c0_19 = arith.constant 0 : index
    %c0_20 = arith.constant 0 : index
    %29 = vector.load %arg6[%c0_18, %c0_19, %c0_20] : memref<6x128x128xf32, #tpu.memory_space<vmem>>, vector<1x128x128xf32>
    %30 = vector.shape_cast %29 : vector<1x128x128xf32> to vector<128x128xf32>
    %cst_21 = arith.constant dense<0.000000e+00> : vector<8x128xf32>
    %31 = tpu.matmul %11, %30, %cst_21 {dimension_numbers = #tpu.dot_dimension_numbers<[1], [0], [0], [1], [0, 0, 1, 1], [], []>} : vector<8x128xf32>, vector<128x128xf32>, vector<8x128xf32> -> vector<8x128xf32>
    %c1 = arith.constant 1 : index
    %c0_22 = arith.constant 0 : index
    %c0_23 = arith.constant 0 : index
    %32 = vector.load %arg6[%c1, %c0_22, %c0_23] : memref<6x128x128xf32, #tpu.memory_space<vmem>>, vector<1x128x128xf32>
    %33 = vector.shape_cast %32 : vector<1x128x128xf32> to vector<128x128xf32>
    %cst_24 = arith.constant dense<0.000000e+00> : vector<8x128xf32>
    %34 = tpu.matmul %12, %33, %cst_24 {dimension_numbers = #tpu.dot_dimension_numbers<[1], [0], [0], [1], [0, 0, 1, 1], [], []>} : vector<8x128xf32>, vector<128x128xf32>, vector<8x128xf32> -> vector<8x128xf32>
    %35 = arith.addf %31, %34 : vector<8x128xf32>
    %c2 = arith.constant 2 : index
    %c0_25 = arith.constant 0 : index
    %c0_26 = arith.constant 0 : index
    %36 = vector.load %arg6[%c2, %c0_25, %c0_26] : memref<6x128x128xf32, #tpu.memory_space<vmem>>, vector<1x128x128xf32>
    %37 = vector.shape_cast %36 : vector<1x128x128xf32> to vector<128x128xf32>
    %cst_27 = arith.constant dense<0.000000e+00> : vector<8x128xf32>
    %38 = tpu.matmul %15, %37, %cst_27 {dimension_numbers = #tpu.dot_dimension_numbers<[1], [0], [0], [1], [0, 0, 1, 1], [], []>} : vector<8x128xf32>, vector<128x128xf32>, vector<8x128xf32> -> vector<8x128xf32>
    %39 = arith.addf %35, %38 : vector<8x128xf32>
    %c3 = arith.constant 3 : index
    %c0_28 = arith.constant 0 : index
    %c0_29 = arith.constant 0 : index
    %40 = vector.load %arg6[%c3, %c0_28, %c0_29] : memref<6x128x128xf32, #tpu.memory_space<vmem>>, vector<1x128x128xf32>
    %41 = vector.shape_cast %40 : vector<1x128x128xf32> to vector<128x128xf32>
    %cst_30 = arith.constant dense<0.000000e+00> : vector<8x128xf32>
    %42 = tpu.matmul %20, %41, %cst_30 {dimension_numbers = #tpu.dot_dimension_numbers<[1], [0], [0], [1], [0, 0, 1, 1], [], []>} : vector<8x128xf32>, vector<128x128xf32>, vector<8x128xf32> -> vector<8x128xf32>
    %43 = arith.addf %39, %42 : vector<8x128xf32>
    %c4 = arith.constant 4 : index
    %c0_31 = arith.constant 0 : index
    %c0_32 = arith.constant 0 : index
    %44 = vector.load %arg6[%c4, %c0_31, %c0_32] : memref<6x128x128xf32, #tpu.memory_space<vmem>>, vector<1x128x128xf32>
    %45 = vector.shape_cast %44 : vector<1x128x128xf32> to vector<128x128xf32>
    %cst_33 = arith.constant dense<0.000000e+00> : vector<8x128xf32>
    %46 = tpu.matmul %23, %45, %cst_33 {dimension_numbers = #tpu.dot_dimension_numbers<[1], [0], [0], [1], [0, 0, 1, 1], [], []>} : vector<8x128xf32>, vector<128x128xf32>, vector<8x128xf32> -> vector<8x128xf32>
    %47 = arith.addf %43, %46 : vector<8x128xf32>
    %c5 = arith.constant 5 : index
    %c0_34 = arith.constant 0 : index
    %c0_35 = arith.constant 0 : index
    %48 = vector.load %arg6[%c5, %c0_34, %c0_35] : memref<6x128x128xf32, #tpu.memory_space<vmem>>, vector<1x128x128xf32>
    %49 = vector.shape_cast %48 : vector<1x128x128xf32> to vector<128x128xf32>
    %cst_36 = arith.constant dense<0.000000e+00> : vector<8x128xf32>
    %50 = tpu.matmul %28, %49, %cst_36 {dimension_numbers = #tpu.dot_dimension_numbers<[1], [0], [0], [1], [0, 0, 1, 1], [], []>} : vector<8x128xf32>, vector<128x128xf32>, vector<8x128xf32> -> vector<8x128xf32>
    %51 = arith.addf %47, %50 : vector<8x128xf32>
    %c0_37 = arith.constant 0 : index
    %c0_38 = arith.constant 0 : index
    %52 = vector.load %arg7[%c0_37, %c0_38] : memref<1x128xf32, #tpu.memory_space<vmem>>, vector<1x128xf32>
    %53 = vector.broadcast %52 : vector<1x128xf32> to vector<8x128xf32>
    %54 = arith.addf %51, %53 : vector<8x128xf32>
    %c0_39 = arith.constant 0 : index
    %c0_40 = arith.constant 0 : index
    %55 = vector.load %arg8[%c0_39, %c0_40] : memref<8x128xf32, #tpu.memory_space<vmem>>, vector<8x128xf32>
    tpu.vector_store %arg8[%c0_39, %c0_40], %54 {strides = array<i32>} : memref<8x128xf32, #tpu.memory_space<vmem>>, vector<8x128xf32>,
    return
  }
  func.func @transform_0(%arg0: i32) -> (i32, i32) {
    %c0_i32 = arith.constant 0 : i32
    %c0_i32_0 = arith.constant 0 : i32
    return %arg0, %c0_i32 : i32, i32
  }
  func.func @transform_1(%arg0: i32) -> (i32, i32) {
    %c0_i32 = arith.constant 0 : i32
    %c0_i32_0 = arith.constant 0 : i32
    %c0_i32_1 = arith.constant 0 : i32
    return %c0_i32, %c0_i32_0 : i32, i32
  }
  func.func @transform_2(%arg0: i32) -> (i32, i32) {
    %c0_i32 = arith.constant 0 : i32
    %c0_i32_0 = arith.constant 0 : i32
    %c0_i32_1 = arith.constant 0 : i32
    return %c0_i32, %c0_i32_0 : i32, i32
  }
  func.func @transform_3(%arg0: i32) -> (i32, i32) {
    %c0_i32 = arith.constant 0 : i32
    %c0_i32_0 = arith.constant 0 : i32
    %c0_i32_1 = arith.constant 0 : i32
    return %c0_i32, %c0_i32_0 : i32, i32
  }
  func.func @transform_4(%arg0: i32) -> (i32, i32) {
    %c0_i32 = arith.constant 0 : i32
    %c0_i32_0 = arith.constant 0 : i32
    %c0_i32_1 = arith.constant 0 : i32
    return %c0_i32, %c0_i32_0 : i32, i32
  }
  func.func @transform_5(%arg0: i32) -> (i32, i32, i32) {
    %c0_i32 = arith.constant 0 : i32
    %c0_i32_0 = arith.constant 0 : i32
    %c0_i32_1 = arith.constant 0 : i32
    %c0_i32_2 = arith.constant 0 : i32
    return %c0_i32, %c0_i32_0, %c0_i32_1 : i32, i32, i32
  }
  func.func @transform_6(%arg0: i32) -> (i32, i32) {
    %c0_i32 = arith.constant 0 : i32
    %c0_i32_0 = arith.constant 0 : i32
    %c0_i32_1 = arith.constant 0 : i32
    return %c0_i32, %c0_i32_0 : i32, i32
  }
  func.func @transform_7(%arg0: i32) -> (i32, i32) {
    %c0_i32 = arith.constant 0 : i32
    %c0_i32_0 = arith.constant 0 : i32
    return %arg0, %c0_i32 : i32, i32
  }
}

</mosaic_0001>

<llo_original>
// kernel: tpu_custom_call.1
$region0: #{tpu_custom_call.1}
  #allocation0 [shape = 'u32[]', space=smem, size = 0x4, offset = 0x4, fixed_abs, tag = 'smem constant byte address 0x4 - core index']
  #allocation1 [shape = 'u32[144,128]{1,0:T(1,128)}', space=vmem, size = 0x12000, scoped, tag = 'internal scratch']
  %s0 = inlined_call_operand.hbm [shape: f32[32,128], index: 0, kind: input, shape index: {}]
  %s1 = inlined_call_operand.hbm [shape: f32[128,512], index: 1, kind: input, shape index: {}]
  %s2 = inlined_call_operand.hbm [shape: f32[128,512], index: 2, kind: input, shape index: {}]
  %s3 = inlined_call_operand.hbm [shape: f32[512,128], index: 3, kind: input, shape index: {}]
  %s4 = inlined_call_operand.hbm [shape: f32[128,128], index: 4, kind: input, shape index: {}]
  %s5 = inlined_call_operand.hbm [shape: f32[6,128,128], index: 5, kind: input, shape index: {}]
  %s6 = inlined_call_operand.vmem [shape: f32[1,128], index: 6, kind: input, shape index: {}]
  %s7 = inlined_call_operand.hbm [shape: f32[32,128], index: 7, kind: output, shape index: {}]
  %s8 = sld [smem:[#allocation0]]
  $region85: #{tpu_custom_call.1} parent=0
    _
  %s10 = ssub.s32 1, %s8
  %s11 = scalar_select 0, %s10, %s8
  $region1: #{tpu_custom_call.1} parent=0
    #allocation2 [shape = 'u8[8192]{0}', space=vmem, size = 0x2000, scoped, tag = 'input window, operand 0']
    #allocation3 [shape = 's32[2]{0}', space=sflag, size = 0x8, scoped, tag = 'scoped memory for tpu_custom_call.1']
    #allocation4 [shape = 's32[2]{0}', space=sflag, size = 0x8, scoped, tag = 'scoped memory for tpu_custom_call.1']
    #allocation5 [shape = 'u8[262144]{0}', space=vmem, size = 0x40000, scoped, tag = 'input window, operand 1, single buffered']
    #allocation6 [shape = 's32[1]{0}', space=sflag, size = 0x4, scoped, tag = 'scoped memory for tpu_custom_call.1']
    #allocation7 [shape = 'u8[262144]{0}', space=vmem, size = 0x40000, scoped, tag = 'input window, operand 2, single buffered']
    #allocation8 [shape = 'u8[262144]{0}', space=vmem, size = 0x40000, scoped, tag = 'input window, operand 3, single buffered']
    #allocation9 [shape = 's32[1]{0}', space=sflag, size = 0x4, scoped, tag = 'scoped memory for tpu_custom_call.1']
    #allocation10 [shape = 'u8[65536]{0}', space=vmem, size = 0x10000, scoped, tag = 'input window, operand 4, single buffered']
    #allocation11 [shape = 'u8[393216]{0}', space=vmem, size = 0x60000, scoped, tag = 'input window, operand 5, single buffered']
    #allocation12 [shape = 's32[1]{0}', space=sflag, size = 0x4, scoped, tag = 'scoped memory for tpu_custom_call.1']
    #allocation13 [shape = 'u8[8192]{0}', space=vmem, size = 0x2000, scoped, tag = 'output window, operand 0']
    %12 = vsyncpa [#allocation3], 0
    %s13 = scalar_lea.sflag [#allocation3], 1
    %14 = vsyncpa %s13, 0
    %15 = vsyncpa [#allocation6], 0
    %16 = vsyncpa [#allocation9], 0
    %17 = vsyncpa [#allocation12], 0
    %18 = vsyncpa [#allocation4], 0
    %s19 = scalar_lea.sflag [#allocation4], 1
    %20 = vsyncpa %s19, 0
    loop: start=0, step=1, limit=6
    $region2: #{tpu_custom_call.1} parent=1 // loop_pre_header
      _
    $region3: #{tpu_custom_call.1} parent=1 // loop_header
      %s22 = sphi 0, %s26
      %p23 = scmp.ge.s32.totalorder %s22, 6
      %s32 = sphi 0, %s34
      %s35 = sphi 0, %s32
      %s36 = sphi 0, %s35
      %s52 = sphi 0, %s36
      %s56 = sphi 0, %s56
      %s58 = sphi 0, %s56
      %s59 = sphi 0, %s58
      %s73 = sphi 0, %s59
      %s77 = sphi 0, %s77
      %s79 = sphi 0, %s77
      %s80 = sphi 0, %s79
      %s94 = sphi 0, %s80
      %s98 = sphi 0, %s98
      %s100 = sphi 0, %s98
      %s101 = sphi 0, %s100
      %s115 = sphi 0, %s101
      %s119 = sphi 0, %s119
      %s121 = sphi 0, %s119
      %s122 = sphi 0, %s121
      %s136 = sphi 0, %s122
      %s140 = sphi 0, %s140
      %s142 = sphi 0, %s140
      %s143 = sphi 0, %s142
      %s157 = sphi 0, %s143
      %s161 = sphi 0, %s161
      %s163 = sphi 0, %s161
      %s164 = sphi 0, %s163
      %s178 = sphi 0, %s164
      %s184 = sphi 0, %s186
      %s187 = sphi 0, %s184
      %s188 = sphi 0, %s187
      %s204 = sphi 0, %s188
    $region4: #{tpu_custom_call.1} parent=1 // loop_header_branch
      %25 = sbr.rel (%p23) target = $region8
    $region5: #{tpu_custom_call.1} parent=1 // loop_body
      %s27 = ssub.s32 %s22, 1
      %s28 = ssub.s32 %s22, 2
      %s29 = sadd.s32 %s22, 1
      %s30 = ssub.s32 %s22, %s29
      %p31 = scmp.eq.s32.totalorder %s30, 0
      %s33 = sadd.s32 %s32, 1
      %s34 = scalar_select %p31, %s32, %s33
      %p37 = pneg %p31
      %p38 = scmp.eq.s32.totalorder %s22, 3
      %p39 = por %p37, %p38
      %p40 = scmp.ne.s32.totalorder %s32, %s35
      %p41 = scmp.eq.s32.totalorder %s22, 0
      %p42 = por %p40, %p41
      %p43 = scmp.ne.s32.totalorder %s32, %s35
      %p44 = scmp.eq.s32.totalorder %s27, 3
      %p45 = por %p43, %p44
      %p46 = scmp.ne.s32.totalorder %s35, %s36
      %p47 = scmp.eq.s32.totalorder %s27, 0
      %p48 = por %p46, %p47
      %p49 = scmp.ne.s32.totalorder %s35, %s36
      %p50 = scmp.eq.s32.totalorder %s28, 3
      %p51 = por %p49, %p50
      %p53 = scmp.ne.s32.totalorder %s36, %s52
      %p54 = scmp.eq.s32.totalorder %s28, 0
      %p55 = por %p53, %p54
      %s57 = sadd.s32 %s56, 1
      %p60 = scmp.eq.s32.totalorder %s22, 3
      %p61 = scmp.ne.s32.totalorder %s56, %s58
      %p62 = scmp.eq.s32.totalorder %s22, 0
      %p63 = por %p61, %p62
      %p64 = scmp.ne.s32.totalorder %s56, %s58
      %p65 = scmp.eq.s32.totalorder %s27, 3
      %p66 = por %p64, %p65
      %p67 = scmp.ne.s32.totalorder %s58, %s59
      %p68 = scmp.eq.s32.totalorder %s27, 0
      %p69 = por %p67, %p68
      %p70 = scmp.ne.s32.totalorder %s58, %s59
      %p71 = scmp.eq.s32.totalorder %s28, 3
      %p72 = por %p70, %p71
      %p74 = scmp.ne.s32.totalorder %s59, %s73
      %p75 = scmp.eq.s32.totalorder %s28, 0
      %p76 = por %p74, %p75
      %s78 = sadd.s32 %s77, 1
      %p81 = scmp.eq.s32.totalorder %s22, 3
      %p82 = scmp.ne.s32.totalorder %s77, %s79
      %p83 = scmp.eq.s32.totalorder %s22, 0
      %p84 = por %p82, %p83
      %p85 = scmp.ne.s32.totalorder %s77, %s79
      %p86 = scmp.eq.s32.totalorder %s27, 3
      %p87 = por %p85, %p86
      %p88 = scmp.ne.s32.totalorder %s79, %s80
      %p89 = scmp.eq.s32.totalorder %s27, 0
      %p90 = por %p88, %p89
      %p91 = scmp.ne.s32.totalorder %s79, %s80
      %p92 = scmp.eq.s32.totalorder %s28, 3
      %p93 = por %p91, %p92
      %p95 = scmp.ne.s32.totalorder %s80, %s94
      %p96 = scmp.eq.s32.totalorder %s28, 0
      %p97 = por %p95, %p96
      %s99 = sadd.s32 %s98, 1
      %p102 = scmp.eq.s32.totalorder %s22, 3
      %p103 = scmp.ne.s32.totalorder %s98, %s100
      %p104 = scmp.eq.s32.totalorder %s22, 0
      %p105 = por %p103, %p104
      %p106 = scmp.ne.s32.totalorder %s98, %s100
      %p107 = scmp.eq.s32.totalorder %s27, 3
      %p108 = por %p106, %p107
      %p109 = scmp.ne.s32.totalorder %s100, %s101
      %p110 = scmp.eq.s32.totalorder %s27, 0
      %p111 = por %p109, %p110
      %p112 = scmp.ne.s32.totalorder %s100, %s101
      %p113 = scmp.eq.s32.totalorder %s28, 3
      %p114 = por %p112, %p113
      %p116 = scmp.ne.s32.totalorder %s101, %s115
      %p117 = scmp.eq.s32.totalorder %s28, 0
      %p118 = por %p116, %p117
      %s120 = sadd.s32 %s119, 1
      %p123 = scmp.eq.s32.totalorder %s22, 3
      %p124 = scmp.ne.s32.totalorder %s119, %s121
      %p125 = scmp.eq.s32.totalorder %s22, 0
      %p126 = por %p124, %p125
      %p127 = scmp.ne.s32.totalorder %s119, %s121
      %p128 = scmp.eq.s32.totalorder %s27, 3
      %p129 = por %p127, %p128
      %p130 = scmp.ne.s32.totalorder %s121, %s122
      %p131 = scmp.eq.s32.totalorder %s27, 0
      %p132 = por %p130, %p131
      %p133 = scmp.ne.s32.totalorder %s121, %s122
      %p134 = scmp.eq.s32.totalorder %s28, 3
      %p135 = por %p133, %p134
      %p137 = scmp.ne.s32.totalorder %s122, %s136
      %p138 = scmp.eq.s32.totalorder %s28, 0
      %p139 = por %p137, %p138
      %s141 = sadd.s32 %s140, 1
      %p144 = scmp.eq.s32.totalorder %s22, 3
      %p145 = scmp.ne.s32.totalorder %s140, %s142
      %p146 = scmp.eq.s32.totalorder %s22, 0
      %p147 = por %p145, %p146
      %p148 = scmp.ne.s32.totalorder %s140, %s142
      %p149 = scmp.eq.s32.totalorder %s27, 3
      %p150 = por %p148, %p149
      %p151 = scmp.ne.s32.totalorder %s142, %s143
      %p152 = scmp.eq.s32.totalorder %s27, 0
      %p153 = por %p151, %p152
      %p154 = scmp.ne.s32.totalorder %s142, %s143
      %p155 = scmp.eq.s32.totalorder %s28, 3
      %p156 = por %p154, %p155
      %p158 = scmp.ne.s32.totalorder %s143, %s157
      %p159 = scmp.eq.s32.totalorder %s28, 0
      %p160 = por %p158, %p159
      %s162 = sadd.s32 %s161, 1
      %p165 = scmp.eq.s32.totalorder %s22, 3
      %p166 = scmp.ne.s32.totalorder %s161, %s163
      %p167 = scmp.eq.s32.totalorder %s22, 0
      %p168 = por %p166, %p167
      %p169 = scmp.ne.s32.totalorder %s161, %s163
      %p170 = scmp.eq.s32.totalorder %s27, 3
      %p171 = por %p169, %p170
      %p172 = scmp.ne.s32.totalorder %s163, %s164
      %p173 = scmp.eq.s32.totalorder %s27, 0
      %p174 = por %p172, %p173
      %p175 = scmp.ne.s32.totalorder %s163, %s164
      %p176 = scmp.eq.s32.totalorder %s28, 3
      %p177 = por %p175, %p176
      %p179 = scmp.ne.s32.totalorder %s164, %s178
      %p180 = scmp.eq.s32.totalorder %s28, 0
      %p181 = por %p179, %p180
      %s182 = ssub.s32 %s22, %s29
      %p183 = scmp.eq.s32.totalorder %s182, 0
      %s185 = sadd.s32 %s184, 1
      %s186 = scalar_select %p183, %s184, %s185
      %p189 = pneg %p183
      %p190 = scmp.eq.s32.totalorder %s22, 3
      %p191 = por %p189, %p190
      %p192 = scmp.ne.s32.totalorder %s184, %s187
      %p193 = scmp.eq.s32.totalorder %s22, 0
      %p194 = por %p192, %p193
      %p195 = scmp.ne.s32.totalorder %s184, %s187
      %p196 = scmp.eq.s32.totalorder %s27, 3
      %p197 = por %p195, %p196
      %p198 = scmp.ne.s32.totalorder %s187, %s188
      %p199 = scmp.eq.s32.totalorder %s27, 0
      %p200 = por %p198, %p199
      %p201 = scmp.ne.s32.totalorder %s187, %s188
      %p202 = scmp.eq.s32.totalorder %s28, 3
      %p203 = por %p201, %p202
      %p205 = scmp.ne.s32.totalorder %s188, %s204
      %p206 = scmp.eq.s32.totalorder %s28, 0
      %p207 = por %p205, %p206
      %p208 = scmp.le.s32.totalorder 1, %s22
      %p209 = scmp.lt.s32.totalorder %s22, 5
      %p210 = pnand %p208, %p209
      %p211 = pneg %p210
      // Predicated region
      $region9: #{tpu_custom_call.1} parent=5 // pred_check
        _
      $region10: #{tpu_custom_call.1} parent=5 // pred_check_branch
        %213 = sbr.rel (%p210) target = $region12
      $region11: #{tpu_custom_call.1} parent=5 // pred_region
        %s214 = ssub.s32 %s22, 1
        // Predicated region
        $region13: #{tpu_custom_call.1} parent=11 // pred_check
          %p215 = pneg %p69
        $region14: #{tpu_custom_call.1} parent=11 // pred_check_branch
          %217 = sbr.rel (%p215) target = $region16
        $region15: #{tpu_custom_call.1} parent=11 // pred_region
          %s219 = ssub.s32 8192, 8192
          %220 = vsyncadd [#allocation6], %s219
          %s221 = sshll.u32 [#allocation5], 4
          %s222 = int_to_ptr.vmem [resolvable:$true] %s221
          %227 = dma.hbm_to_vmem [thread:$0]  %s1, 8192, %s222, [#allocation6], 512, 512, 32
        $region16: #{tpu_custom_call.1} parent=11 // pred_fallthru
          _
        // Predicated region
        $region17: #{tpu_custom_call.1} parent=11 // pred_check
          %p228 = pneg %p90
        $region18: #{tpu_custom_call.1} parent=11 // pred_check_branch
          %230 = sbr.rel (%p228) target = $region20
        $region19: #{tpu_custom_call.1} parent=11 // pred_region
          %s232 = ssub.s32 8192, 8192
          %233 = vsyncadd [#allocation6], %s232
          %s234 = sshll.u32 [#allocation7], 4
          %s235 = int_to_ptr.vmem [resolvable:$true] %s234
          %240 = dma.hbm_to_vmem [thread:$0]  %s2, 8192, %s235, [#allocation6], 512, 512, 32
        $region20: #{tpu_custom_call.1} parent=11 // pred_fallthru
          _
        // Predicated region
        $region21: #{tpu_custom_call.1} parent=11 // pred_check
          %p241 = pneg %p111
        $region22: #{tpu_custom_call.1} parent=11 // pred_check_branch
          %243 = sbr.rel (%p241) target = $region24
        $region23: #{tpu_custom_call.1} parent=11 // pred_region
          %s245 = ssub.s32 8192, 8192
          %246 = vsyncadd [#allocation9], %s245
          %s247 = sshll.u32 [#allocation8], 4
          %s248 = int_to_ptr.vmem [resolvable:$true] %s247
          %253 = dma.hbm_to_vmem [thread:$0]  %s3, 8192, %s248, [#allocation9], 128, 128, 8
        $region24: #{tpu_custom_call.1} parent=11 // pred_fallthru
          _
        // Predicated region
        $region25: #{tpu_custom_call.1} parent=11 // pred_check
          %p254 = pneg %p132
        $region26: #{tpu_custom_call.1} parent=11 // pred_check_branch
          %256 = sbr.rel (%p254) target = $region28
        $region27: #{tpu_custom_call.1} parent=11 // pred_region
          %s258 = ssub.s32 2048, 2048
          %259 = vsyncadd [#allocation9], %s258
          %s260 = sshll.u32 [#allocation10], 4
          %s261 = int_to_ptr.vmem [resolvable:$true] %s260
          %266 = dma.hbm_to_vmem [thread:$0]  %s4, 2048, %s261, [#allocation9], 128, 128, 8
        $region28: #{tpu_custom_call.1} parent=11 // pred_fallthru
          _
        // Predicated region
        $region29: #{tpu_custom_call.1} parent=11 // pred_check
          %p267 = pneg %p153
        $region30: #{tpu_custom_call.1} parent=11 // pred_check_branch
          %269 = sbr.rel (%p267) target = $region32
        $region31: #{tpu_custom_call.1} parent=11 // pred_region
          %s271 = ssub.s32 12288, 12288
          %272 = vsyncadd [#allocation12], %s271
          %s273 = sshll.u32 [#allocation11], 4
          %s274 = int_to_ptr.vmem [resolvable:$true] %s273
          %279 = dma.hbm_to_vmem [thread:$0]  %s5, 12288, %s274, [#allocation12], 128, 128, 8
        $region32: #{tpu_custom_call.1} parent=11 // pred_fallthru
          _
        // Predicated region
        $region33: #{tpu_custom_call.1} parent=11 // pred_check
          %p280 = pneg %p174
        $region34: #{tpu_custom_call.1} parent=11 // pred_check_branch
          %282 = sbr.rel (%p280) target = $region36
        $region35: #{tpu_custom_call.1} parent=11 // pred_region
          _
        $region36: #{tpu_custom_call.1} parent=11 // pred_fallthru
          _
      $region12: #{tpu_custom_call.1} parent=5 // pred_fallthru
        _
      %p283 = scmp.lt.s32.totalorder %s22, 4
      // Predicated region
      $region37: #{tpu_custom_call.1} parent=5 // pred_check
        %p284 = pneg %p283
      $region38: #{tpu_custom_call.1} parent=5 // pred_check_branch
        %286 = sbr.rel (%p284) target = $region40
      $region39: #{tpu_custom_call.1} parent=5 // pred_region
        // Predicated region
        $region41: #{tpu_custom_call.1} parent=39 // pred_check
          %p287 = pneg %p42
        $region42: #{tpu_custom_call.1} parent=39 // pred_check_branch
          %289 = sbr.rel (%p287) target = $region44
        $region43: #{tpu_custom_call.1} parent=39 // pred_region
          %s290 = sand.u32 %s32, 1
          %s291 = scalar_lea.sflag [#allocation3], %s290
          %s292 = sand.u32 %s32, 1
          %s293 = smul.addr %s292, 8
          %s294 = scalar_lea.vmem [#allocation2], %s293
          %s296 = ssub.s32 128, 128
          %297 = vsyncadd %s291, %s296
          %s298 = smul.addr %s22, 128
          %s299 = scalar_lea.hbm %s0, %s298
          %s301 = sshll.u32 %s294, 4
          %s302 = int_to_ptr.vmem [resolvable:$true] %s301
          %304 = dma.hbm_to_vmem [thread:$0]  %s299, 128, %s302, %s291
        $region44: #{tpu_custom_call.1} parent=39 // pred_fallthru
          _
      $region40: #{tpu_custom_call.1} parent=5 // pred_fallthru
        _
      %p305 = scmp.le.s32.totalorder 1, %s22
      %p306 = scmp.lt.s32.totalorder %s22, 5
      %p307 = pnand %p305, %p306
      %p308 = pneg %p307
      // Predicated region
      $region45: #{tpu_custom_call.1} parent=5 // pred_check
        _
      $region46: #{tpu_custom_call.1} parent=5 // pred_check_branch
        %310 = sbr.rel (%p307) target = $region48
      $region47: #{tpu_custom_call.1} parent=5 // pred_region
        %s311 = ssub.s32 %s22, 1
        %s312 = sand.u32 %s35, 1
        %s313 = scalar_lea.sflag [#allocation3], %s312
        %s314 = sand.u32 %s35, 1
        %s315 = smul.addr %s314, 8
        %s316 = scalar_lea.vmem [#allocation2], %s315
        // Predicated region
        $region49: #{tpu_custom_call.1} parent=47 // pred_check
          %p317 = pneg %p48
        $region50: #{tpu_custom_call.1} parent=47 // pred_check_branch
          %319 = sbr.rel (%p317) target = $region52
        $region51: #{tpu_custom_call.1} parent=47 // pred_region
          %320 = dma.done %s313, 128
        $region52: #{tpu_custom_call.1} parent=47 // pred_fallthru
          _
        // Predicated region
        $region53: #{tpu_custom_call.1} parent=47 // pred_check
          %p321 = pneg %p69
        $region54: #{tpu_custom_call.1} parent=47 // pred_check_branch
          %323 = sbr.rel (%p321) target = $region56
        $region55: #{tpu_custom_call.1} parent=47 // pred_region
          %324 = dma.done [#allocation6], 8192
        $region56: #{tpu_custom_call.1} parent=47 // pred_fallthru
          _
        // Predicated region
        $region57: #{tpu_custom_call.1} parent=47 // pred_check
          %p325 = pneg %p90
        $region58: #{tpu_custom_call.1} parent=47 // pred_check_branch
          %327 = sbr.rel (%p325) target = $region60
        $region59: #{tpu_custom_call.1} parent=47 // pred_region
          %328 = dma.done [#allocation6], 8192
        $region60: #{tpu_custom_call.1} parent=47 // pred_fallthru
          _
        // Predicated region
        $region61: #{tpu_custom_call.1} parent=47 // pred_check
          %p329 = pneg %p111
        $region62: #{tpu_custom_call.1} parent=47 // pred_check_branch
          %331 = sbr.rel (%p329) target = $region64
        $region63: #{tpu_custom_call.1} parent=47 // pred_region
          %332 = dma.done [#allocation9], 8192
        $region64: #{tpu_custom_call.1} parent=47 // pred_fallthru
          _
        // Predicated region
        $region65: #{tpu_custom_call.1} parent=47 // pred_check
          %p333 = pneg %p132
        $region66: #{tpu_custom_call.1} parent=47 // pred_check_branch
          %335 = sbr.rel (%p333) target = $region68
        $region67: #{tpu_custom_call.1} parent=47 // pred_region
          %336 = dma.done [#allocation9], 2048
        $region68: #{tpu_custom_call.1} parent=47 // pred_fallthru
          _
        // Predicated region
        $region69: #{tpu_custom_call.1} parent=47 // pred_check
          %p337 = pneg %p153
        $region70: #{tpu_custom_call.1} parent=47 // pred_check_branch
          %339 = sbr.rel (%p337) target = $region72
        $region71: #{tpu_custom_call.1} parent=47 // pred_region
          %340 = dma.done [#allocation12], 12288
        $region72: #{tpu_custom_call.1} parent=47 // pred_fallthru
          _
        %s341 = sand.u32 %s35, 1
        %s342 = scalar_lea.sflag [#allocation3], %s341
        %s343 = sand.u32 %s35, 1
        %s344 = smul.addr %s343, 8
        %s345 = scalar_lea.vmem [#allocation2], %s344
        %p346 = pneg %p48
        %p347 = pneg %p45
        %p348 = pneg %p69
        %p349 = pneg %p66
        %p350 = pneg %p90
        %p351 = pneg %p87
        %p352 = pneg %p111
        %p353 = pneg %p108
        %p354 = pneg %p132
        %p355 = pneg %p129
        %p356 = pneg %p153
        %p357 = pneg %p150
        %p358 = pneg %p174
        %p359 = pneg %p171
        %p360 = pneg %p200
        %p361 = pneg %p197
        %s362 = sand.u32 %s187, 1
        %s363 = scalar_lea.sflag [#allocation4], %s362
        %s364 = sand.u32 %s187, 1
        %s365 = smul.addr %s364, 8
        %s366 = scalar_lea.vmem [#allocation13], %s365
        %v367 = vld [vmem:[%s316] sm:$0xff]
        %v368 = vld [vmem:[#allocation5] sm:$0xff]
        %v369 = vld [vmem:[#allocation5 + $0x8] sm:$0xff]
        %v370 = vld [vmem:[#allocation5 + $0x10] sm:$0xff]
        %v371 = vld [vmem:[#allocation5 + $0x18] sm:$0xff]
        %v372 = vld [vmem:[#allocation5 + $0x20] sm:$0xff]
        %v373 = vld [vmem:[#allocation5 + $0x28] sm:$0xff]
        %v374 = vld [vmem:[#allocation5 + $0x30] sm:$0xff]
        %v375 = vld [vmem:[#allocation5 + $0x38] sm:$0xff]
        %v376 = vld [vmem:[#allocation5 + $0x40] sm:$0xff]
        %v377 = vld [vmem:[#allocation5 + $0x48] sm:$0xff]
        %v378 = vld [vmem:[#allocation5 + $0x50] sm:$0xff]
        %v379 = vld [vmem:[#allocation5 + $0x58] sm:$0xff]
        %v380 = vld [vmem:[#allocation5 + $0x60] sm:$0xff]
        %v381 = vld [vmem:[#allocation5 + $0x68] sm:$0xff]
        %v382 = vld [vmem:[#allocation5 + $0x70] sm:$0xff]
        %v383 = vld [vmem:[#allocation5 + $0x78] sm:$0xff]
        %v384 = vld [vmem:[#allocation5 + $0x80] sm:$0xff]
        %v385 = vld [vmem:[#allocation5 + $0x88] sm:$0xff]
        %v386 = vld [vmem:[#allocation5 + $0x90] sm:$0xff]
        %v387 = vld [vmem:[#allocation5 + $0x98] sm:$0xff]
        %v388 = vld [vmem:[#allocation5 + $0xa0] sm:$0xff]
        %v389 = vld [vmem:[#allocation5 + $0xa8] sm:$0xff]
        %v390 = vld [vmem:[#allocation5 + $0xb0] sm:$0xff]
        %v391 = vld [vmem:[#allocation5 + $0xb8] sm:$0xff]
        %v392 = vld [vmem:[#allocation5 + $0xc0] sm:$0xff]
        %v393 = vld [vmem:[#allocation5 + $0xc8] sm:$0xff]
        %v394 = vld [vmem:[#allocation5 + $0xd0] sm:$0xff]
        %v395 = vld [vmem:[#allocation5 + $0xd8] sm:$0xff]
        %v396 = vld [vmem:[#allocation5 + $0xe0] sm:$0xff]
        %v397 = vld [vmem:[#allocation5 + $0xe8] sm:$0xff]
        %v398 = vld [vmem:[#allocation5 + $0xf0] sm:$0xff]
        %v399 = vld [vmem:[#allocation5 + $0xf8] sm:$0xff]
        %v400 = vld [vmem:[#allocation5 + $0x100] sm:$0xff]
        %v401 = vld [vmem:[#allocation5 + $0x108] sm:$0xff]
        %v402 = vld [vmem:[#allocation5 + $0x110] sm:$0xff]
        %v403 = vld [vmem:[#allocation5 + $0x118] sm:$0xff]
        %v404 = vld [vmem:[#allocation5 + $0x120] sm:$0xff]
        %v405 = vld [vmem:[#allocation5 + $0x128] sm:$0xff]
        %v406 = vld [vmem:[#allocation5 + $0x130] sm:$0xff]
        %v407 = vld [vmem:[#allocation5 + $0x138] sm:$0xff]
        %v408 = vld [vmem:[#allocation5 + $0x140] sm:$0xff]
        %v409 = vld [vmem:[#allocation5 + $0x148] sm:$0xff]
        %v410 = vld [vmem:[#allocation5 + $0x150] sm:$0xff]
        %v411 = vld [vmem:[#allocation5 + $0x158] sm:$0xff]
        %v412 = vld [vmem:[#allocation5 + $0x160] sm:$0xff]
        %v413 = vld [vmem:[#allocation5 + $0x168] sm:$0xff]
        %v414 = vld [vmem:[#allocation5 + $0x170] sm:$0xff]
        %v415 = vld [vmem:[#allocation5 + $0x178] sm:$0xff]
        %v416 = vld [vmem:[#allocation5 + $0x180] sm:$0xff]
        %v417 = vld [vmem:[#allocation5 + $0x188] sm:$0xff]
        %v418 = vld [vmem:[#allocation5 + $0x190] sm:$0xff]
        %v419 = vld [vmem:[#allocation5 + $0x198] sm:$0xff]
        %v420 = vld [vmem:[#allocation5 + $0x1a0] sm:$0xff]
        %v421 = vld [vmem:[#allocation5 + $0x1a8] sm:$0xff]
        %v422 = vld [vmem:[#allocation5 + $0x1b0] sm:$0xff]
        %v423 = vld [vmem:[#allocation5 + $0x1b8] sm:$0xff]
        %v424 = vld [vmem:[#allocation5 + $0x1c0] sm:$0xff]
        %v425 = vld [vmem:[#allocation5 + $0x1c8] sm:$0xff]
        %v426 = vld [vmem:[#allocation5 + $0x1d0] sm:$0xff]
        %v427 = vld [vmem:[#allocation5 + $0x1d8] sm:$0xff]
        %v428 = vld [vmem:[#allocation5 + $0x1e0] sm:$0xff]
        %v429 = vld [vmem:[#allocation5 + $0x1e8] sm:$0xff]
        %v430 = vld [vmem:[#allocation5 + $0x1f0] sm:$0xff]
        %v431 = vld [vmem:[#allocation5 + $0x1f8] sm:$0xff]
        %432 = vmatprep.subr.mxu0 %v369
        %433 = vmatpush1.msra.mxu0 %v368
        %434 = vmatprep.subr.mxu0 %v373
        %435 = vmatpush1.msra.mxu0 %v372
        %436 = vmatprep.subr.mxu0 %v377
        %437 = vmatpush1.msra.mxu0 %v376
        %438 = vmatprep.subr.mxu0 %v381
        %439 = vmatpush1.msra.mxu0 %v380
        %440 = vmatprep.subr.mxu0 %v385
        %441 = vmatpush1.msra.mxu0 %v384
        %442 = vmatprep.subr.mxu0 %v389
        %443 = vmatpush1.msra.mxu0 %v388
        %444 = vmatprep.subr.mxu0 %v393
        %445 = vmatpush1.msra.mxu0 %v392
        %446 = vmatprep.subr.mxu0 %v397
        %447 = vmatpush1.msra.mxu0 %v396
        %448 = vmatprep.subr.mxu0 %v401
        %449 = vmatpush1.msra.mxu0 %v400
        %450 = vmatprep.subr.mxu0 %v405
        %451 = vmatpush1.msra.mxu0 %v404
        %452 = vmatprep.subr.mxu0 %v409
        %453 = vmatpush1.msra.mxu0 %v408
        %454 = vmatprep.subr.mxu0 %v413
        %455 = vmatpush1.msra.mxu0 %v412
        %456 = vmatprep.subr.mxu0 %v417
        %457 = vmatpush1.msra.mxu0 %v416
        %458 = vmatprep.subr.mxu0 %v421
        %459 = vmatpush1.msra.mxu0 %v420
        %460 = vmatprep.subr.mxu0 %v425
        %461 = vmatpush1.msra.mxu0 %v424
        %462 = vmatprep.subr.mxu0 %v429
        %463 = vmatpush1.msra.mxu0 %v428
        %464 = vmatprep.subr.mxu0 0.0
        %465 = vmatpush1.msra.mxu0 0.0
        %466 = vmatprep.subr.mxu0 0.0
        %467 = vmatpush1.msra.mxu0 0.0
        %468 = vmatprep.subr.mxu0 0.0
        %469 = vmatpush1.msra.mxu0 0.0
        %470 = vmatprep.subr.mxu0 0.0
        %471 = vmatpush1.msra.mxu0 0.0
        %472 = vmatprep.subr.mxu0 0.0
        %473 = vmatpush1.msra.mxu0 0.0
        %474 = vmatprep.subr.mxu0 0.0
        %475 = vmatpush1.msra.mxu0 0.0
        %476 = vmatprep.subr.mxu0 0.0
        %477 = vmatpush1.msra.mxu0 0.0
        %478 = vmatprep.subr.mxu0 0.0
        %479 = vmatpush1.msra.mxu0 0.0
        %480 = vmatprep.subr.mxu0 0.0
        %481 = vmatpush1.msra.mxu0 0.0
        %482 = vmatprep.subr.mxu0 0.0
        %483 = vmatpush1.msra.mxu0 0.0
        %484 = vmatprep.subr.mxu0 0.0
        %485 = vmatpush1.msra.mxu0 0.0
        %486 = vmatprep.subr.mxu0 0.0
        %487 = vmatpush1.msra.mxu0 0.0
        %488 = vmatprep.subr.mxu0 0.0
        %489 = vmatpush1.msra.mxu0 0.0
        %490 = vmatprep.subr.mxu0 0.0
        %491 = vmatpush1.msra.mxu0 0.0
        %492 = vmatprep.subr.mxu0 0.0
        %493 = vmatpush1.msra.mxu0 0.0
        %494 = vmatprep.subr.mxu0 0.0
        %495 = vmatpush1.msra.mxu0 0.0
        %496 = vmatprep.mubr.f32.mxu0 0.0
        %497 = vmatmul.mubr.f32.gmra.mrb[0].mxu0 %v367
        %v498 = vpop.f32.mrb[0].mxu0
        %v499 = vadd.f32 0.0, %v498
        %v500 = vpop.f32.mrb[0].mxu0
        %v501 = vadd.f32 0.0, %v500
        %502 = vdwg.mxu0
        %503 = vmatprep.subr.mxu0 %v371
        %504 = vmatpush1.msra.mxu0 %v370
        %505 = vmatprep.subr.mxu0 %v375
        %506 = vmatpush1.msra.mxu0 %v374
        %507 = vmatprep.subr.mxu0 %v379
        %508 = vmatpush1.msra.mxu0 %v378
        %509 = vmatprep.subr.mxu0 %v383
        %510 = vmatpush1.msra.mxu0 %v382
        %511 = vmatprep.subr.mxu0 %v387
        %512 = vmatpush1.msra.mxu0 %v386
        %513 = vmatprep.subr.mxu0 %v391
        %514 = vmatpush1.msra.mxu0 %v390
        %515 = vmatprep.subr.mxu0 %v395
        %516 = vmatpush1.msra.mxu0 %v394
        %517 = vmatprep.subr.mxu0 %v399
        %518 = vmatpush1.msra.mxu0 %v398
        %519 = vmatprep.subr.mxu0 %v403
        %520 = vmatpush1.msra.mxu0 %v402
        %521 = vmatprep.subr.mxu0 %v407
        %522 = vmatpush1.msra.mxu0 %v406
        %523 = vmatprep.subr.mxu0 %v411
        %524 = vmatpush1.msra.mxu0 %v410
        %525 = vmatprep.subr.mxu0 %v415
        %526 = vmatpush1.msra.mxu0 %v414
        %527 = vmatprep.subr.mxu0 %v419
        %528 = vmatpush1.msra.mxu0 %v418
        %529 = vmatprep.subr.mxu0 %v423
        %530 = vmatpush1.msra.mxu0 %v422
        %531 = vmatprep.subr.mxu0 %v427
        %532 = vmatpush1.msra.mxu0 %v426
        %533 = vmatprep.subr.mxu0 %v431
        %534 = vmatpush1.msra.mxu0 %v430
        %535 = vmatprep.subr.mxu0 0.0
        %536 = vmatpush1.msra.mxu0 0.0
        %537 = vmatprep.subr.mxu0 0.0
        %538 = vmatpush1.msra.mxu0 0.0
        %539 = vmatprep.subr.mxu0 0.0
        %540 = vmatpush1.msra.mxu0 0.0
        %541 = vmatprep.subr.mxu0 0.0
        %542 = vmatpush1.msra.mxu0 0.0
        %543 = vmatprep.subr.mxu0 0.0
        %544 = vmatpush1.msra.mxu0 0.0
        %545 = vmatprep.subr.mxu0 0.0
        %546 = vmatpush1.msra.mxu0 0.0
        %547 = vmatprep.subr.mxu0 0.0
        %548 = vmatpush1.msra.mxu0 0.0
        %549 = vmatprep.subr.mxu0 0.0
        %550 = vmatpush1.msra.mxu0 0.0
        %551 = vmatprep.subr.mxu0 0.0
        %552 = vmatpush1.msra.mxu0 0.0
        %553 = vmatprep.subr.mxu0 0.0
        %554 = vmatpush1.msra.mxu0 0.0
        %555 = vmatprep.subr.mxu0 0.0
        %556 = vmatpush1.msra.mxu0 0.0
        %557 = vmatprep.subr.mxu0 0.0
        %558 = vmatpush1.msra.mxu0 0.0
        %559 = vmatprep.subr.mxu0 0.0
        %560 = vmatpush1.msra.mxu0 0.0
        %561 = vmatprep.subr.mxu0 0.0
        %562 = vmatpush1.msra.mxu0 0.0
        %563 = vmatprep.subr.mxu0 0.0
        %564 = vmatpush1.msra.mxu0 0.0
        %565 = vmatprep.subr.mxu0 0.0
        %566 = vmatpush1.msra.mxu0 0.0
        %567 = vmatprep.mubr.f32.mxu0 0.0
        %568 = vmatmul.mubr.f32.gmra.mrb[0].mxu0 %v367
        %v569 = vpop.f32.mrb[0].mxu0
        %v570 = vadd.f32 0.0, %v569
        %v571 = vpop.f32.mrb[0].mxu0
        %v572 = vadd.f32 0.0, %v571
        %573 = vdwg.mxu0
        %v574 = vld [vmem:[#allocation7] sm:$0xff]
        %v575 = vld [vmem:[#allocation7 + $0x8] sm:$0xff]
        %v576 = vld [vmem:[#allocation7 + $0x10] sm:$0xff]
        %v577 = vld [vmem:[#allocation7 + $0x18] sm:$0xff]
        %v578 = vld [vmem:[#allocation7 + $0x20] sm:$0xff]
        %v579 = vld [vmem:[#allocation7 + $0x28] sm:$0xff]
        %v580 = vld [vmem:[#allocation7 + $0x30] sm:$0xff]
        %v581 = vld [vmem:[#allocation7 + $0x38] sm:$0xff]
        %v582 = vld [vmem:[#allocation7 + $0x40] sm:$0xff]
        %v583 = vld [vmem:[#allocation7 + $0x48] sm:$0xff]
        %v584 = vld [vmem:[#allocation7 + $0x50] sm:$0xff]
        %v585 = vld [vmem:[#allocation7 + $0x58] sm:$0xff]
        %v586 = vld [vmem:[#allocation7 + $0x60] sm:$0xff]
        %v587 = vld [vmem:[#allocation7 + $0x68] sm:$0xff]
        %v588 = vld [vmem:[#allocation7 + $0x70] sm:$0xff]
        %v589 = vld [vmem:[#allocation7 + $0x78] sm:$0xff]
        %v590 = vld [vmem:[#allocation7 + $0x80] sm:$0xff]
        %v591 = vld [vmem:[#allocation7 + $0x88] sm:$0xff]
        %v592 = vld [vmem:[#allocation7 + $0x90] sm:$0xff]
        %v593 = vld [vmem:[#allocation7 + $0x98] sm:$0xff]
        %v594 = vld [vmem:[#allocation7 + $0xa0] sm:$0xff]
        %v595 = vld [vmem:[#allocation7 + $0xa8] sm:$0xff]
        %v596 = vld [vmem:[#allocation7 + $0xb0] sm:$0xff]
        %v597 = vld [vmem:[#allocation7 + $0xb8] sm:$0xff]
        %v598 = vld [vmem:[#allocation7 + $0xc0] sm:$0xff]
        %v599 = vld [vmem:[#allocation7 + $0xc8] sm:$0xff]
        %v600 = vld [vmem:[#allocation7 + $0xd0] sm:$0xff]
        %v601 = vld [vmem:[#allocation7 + $0xd8] sm:$0xff]
        %v602 = vld [vmem:[#allocation7 + $0xe0] sm:$0xff]
        %v603 = vld [vmem:[#allocation7 + $0xe8] sm:$0xff]
        %v604 = vld [vmem:[#allocation7 + $0xf0] sm:$0xff]
        %v605 = vld [vmem:[#allocation7 + $0xf8] sm:$0xff]
        %v606 = vld [vmem:[#allocation7 + $0x100] sm:$0xff]
        %v607 = vld [vmem:[#allocation7 + $0x108] sm:$0xff]
        %v608 = vld [vmem:[#allocation7 + $0x110] sm:$0xff]
        %v609 = vld [vmem:[#allocation7 + $0x118] sm:$0xff]
        %v610 = vld [vmem:[#allocation7 + $0x120] sm:$0xff]
        %v611 = vld [vmem:[#allocation7 + $0x128] sm:$0xff]
        %v612 = vld [vmem:[#allocation7 + $0x130] sm:$0xff]
        %v613 = vld [vmem:[#allocation7 + $0x138] sm:$0xff]
        %v614 = vld [vmem:[#allocation7 + $0x140] sm:$0xff]
        %v615 = vld [vmem:[#allocation7 + $0x148] sm:$0xff]
        %v616 = vld [vmem:[#allocation7 + $0x150] sm:$0xff]
        %v617 = vld [vmem:[#allocation7 + $0x158] sm:$0xff]
        %v618 = vld [vmem:[#allocation7 + $0x160] sm:$0xff]
        %v619 = vld [vmem:[#allocation7 + $0x168] sm:$0xff]
        %v620 = vld [vmem:[#allocation7 + $0x170] sm:$0xff]
        %v621 = vld [vmem:[#allocation7 + $0x178] sm:$0xff]
        %v622 = vld [vmem:[#allocation7 + $0x180] sm:$0xff]
        %v623 = vld [vmem:[#allocation7 + $0x188] sm:$0xff]
        %v624 = vld [vmem:[#allocation7 + $0x190] sm:$0xff]
        %v625 = vld [vmem:[#allocation7 + $0x198] sm:$0xff]
        %v626 = vld [vmem:[#allocation7 + $0x1a0] sm:$0xff]
        %v627 = vld [vmem:[#allocation7 + $0x1a8] sm:$0xff]
        %v628 = vld [vmem:[#allocation7 + $0x1b0] sm:$0xff]
        %v629 = vld [vmem:[#allocation7 + $0x1b8] sm:$0xff]
        %v630 = vld [vmem:[#allocation7 + $0x1c0] sm:$0xff]
        %v631 = vld [vmem:[#allocation7 + $0x1c8] sm:$0xff]
        %v632 = vld [vmem:[#allocation7 + $0x1d0] sm:$0xff]
        %v633 = vld [vmem:[#allocation7 + $0x1d8] sm:$0xff]
        %v634 = vld [vmem:[#allocation7 + $0x1e0] sm:$0xff]
        %v635 = vld [vmem:[#allocation7 + $0x1e8] sm:$0xff]
        %v636 = vld [vmem:[#allocation7 + $0x1f0] sm:$0xff]
        %v637 = vld [vmem:[#allocation7 + $0x1f8] sm:$0xff]
        %638 = vmatprep.subr.mxu0 %v575
        %639 = vmatpush1.msra.mxu0 %v574
        %640 = vmatprep.subr.mxu0 %v579
        %641 = vmatpush1.msra.mxu0 %v578
        %642 = vmatprep.subr.mxu0 %v583
        %643 = vmatpush1.msra.mxu0 %v582
        %644 = vmatprep.subr.mxu0 %v587
        %645 = vmatpush1.msra.mxu0 %v586
        %646 = vmatprep.subr.mxu0 %v591
        %647 = vmatpush1.msra.mxu0 %v590
        %648 = vmatprep.subr.mxu0 %v595
        %649 = vmatpush1.msra.mxu0 %v594
        %650 = vmatprep.subr.mxu0 %v599
        %651 = vmatpush1.msra.mxu0 %v598
        %652 = vmatprep.subr.mxu0 %v603
        %653 = vmatpush1.msra.mxu0 %v602
        %654 = vmatprep.subr.mxu0 %v607
        %655 = vmatpush1.msra.mxu0 %v606
        %656 = vmatprep.subr.mxu0 %v611
        %657 = vmatpush1.msra.mxu0 %v610
        %658 = vmatprep.subr.mxu0 %v615
        %659 = vmatpush1.msra.mxu0 %v614
        %660 = vmatprep.subr.mxu0 %v619
        %661 = vmatpush1.msra.mxu0 %v618
        %662 = vmatprep.subr.mxu0 %v623
        %663 = vmatpush1.msra.mxu0 %v622
        %664 = vmatprep.subr.mxu0 %v627
        %665 = vmatpush1.msra.mxu0 %v626
        %666 = vmatprep.subr.mxu0 %v631
        %667 = vmatpush1.msra.mxu0 %v630
        %668 = vmatprep.subr.mxu0 %v635
        %669 = vmatpush1.msra.mxu0 %v634
        %670 = vmatprep.subr.mxu0 0.0
        %671 = vmatpush1.msra.mxu0 0.0
        %672 = vmatprep.subr.mxu0 0.0
        %673 = vmatpush1.msra.mxu0 0.0
        %674 = vmatprep.subr.mxu0 0.0
        %675 = vmatpush1.msra.mxu0 0.0
        %676 = vmatprep.subr.mxu0 0.0
        %677 = vmatpush1.msra.mxu0 0.0
        %678 = vmatprep.subr.mxu0 0.0
        %679 = vmatpush1.msra.mxu0 0.0
        %680 = vmatprep.subr.mxu0 0.0
        %681 = vmatpush1.msra.mxu0 0.0
        %682 = vmatprep.subr.mxu0 0.0
        %683 = vmatpush1.msra.mxu0 0.0
        %684 = vmatprep.subr.mxu0 0.0
        %685 = vmatpush1.msra.mxu0 0.0
        %686 = vmatprep.subr.mxu0 0.0
        %687 = vmatpush1.msra.mxu0 0.0
        %688 = vmatprep.subr.mxu0 0.0
        %689 = vmatpush1.msra.mxu0 0.0
        %690 = vmatprep.subr.mxu0 0.0
        %691 = vmatpush1.msra.mxu0 0.0
        %692 = vmatprep.subr.mxu0 0.0
        %693 = vmatpush1.msra.mxu0 0.0
        %694 = vmatprep.subr.mxu0 0.0
        %695 = vmatpush1.msra.mxu0 0.0
        %696 = vmatprep.subr.mxu0 0.0
        %697 = vmatpush1.msra.mxu0 0.0
        %698 = vmatprep.subr.mxu0 0.0
        %699 = vmatpush1.msra.mxu0 0.0
        %700 = vmatprep.subr.mxu0 0.0
        %701 = vmatpush1.msra.mxu0 0.0
        %702 = vmatprep.mubr.f32.mxu0 0.0
        %703 = vmatmul.mubr.f32.gmra.mrb[0].mxu0 %v367
        %v704 = vpop.f32.mrb[0].mxu0
        %v705 = vadd.f32 0.0, %v704
        %v706 = vpop.f32.mrb[0].mxu0
        %v707 = vadd.f32 0.0, %v706
        %708 = vdwg.mxu0
        %709 = vmatprep.subr.mxu0 %v577
        %710 = vmatpush1.msra.mxu0 %v576
        %711 = vmatprep.subr.mxu0 %v581
        %712 = vmatpush1.msra.mxu0 %v580
        %713 = vmatprep.subr.mxu0 %v585
        %714 = vmatpush1.msra.mxu0 %v584
        %715 = vmatprep.subr.mxu0 %v589
        %716 = vmatpush1.msra.mxu0 %v588
        %717 = vmatprep.subr.mxu0 %v593
        %718 = vmatpush1.msra.mxu0 %v592
        %719 = vmatprep.subr.mxu0 %v597
        %720 = vmatpush1.msra.mxu0 %v596
        %721 = vmatprep.subr.mxu0 %v601
        %722 = vmatpush1.msra.mxu0 %v600
        %723 = vmatprep.subr.mxu0 %v605
        %724 = vmatpush1.msra.mxu0 %v604
        %725 = vmatprep.subr.mxu0 %v609
        %726 = vmatpush1.msra.mxu0 %v608
        %727 = vmatprep.subr.mxu0 %v613
        %728 = vmatpush1.msra.mxu0 %v612
        %729 = vmatprep.subr.mxu0 %v617
        %730 = vmatpush1.msra.mxu0 %v616
        %731 = vmatprep.subr.mxu0 %v621
        %732 = vmatpush1.msra.mxu0 %v620
        %733 = vmatprep.subr.mxu0 %v625
        %734 = vmatpush1.msra.mxu0 %v624
        %735 = vmatprep.subr.mxu0 %v629
        %736 = vmatpush1.msra.mxu0 %v628
        %737 = vmatprep.subr.mxu0 %v633
        %738 = vmatpush1.msra.mxu0 %v632
        %739 = vmatprep.subr.mxu0 %v637
        %740 = vmatpush1.msra.mxu0 %v636
        %741 = vmatprep.subr.mxu0 0.0
        %742 = vmatpush1.msra.mxu0 0.0
        %743 = vmatprep.subr.mxu0 0.0
        %744 = vmatpush1.msra.mxu0 0.0
        %745 = vmatprep.subr.mxu0 0.0
        %746 = vmatpush1.msra.mxu0 0.0
        %747 = vmatprep.subr.mxu0 0.0
        %748 = vmatpush1.msra.mxu0 0.0
        %749 = vmatprep.subr.mxu0 0.0
        %750 = vmatpush1.msra.mxu0 0.0
        %751 = vmatprep.subr.mxu0 0.0
        %752 = vmatpush1.msra.mxu0 0.0
        %753 = vmatprep.subr.mxu0 0.0
        %754 = vmatpush1.msra.mxu0 0.0
        %755 = vmatprep.subr.mxu0 0.0
        %756 = vmatpush1.msra.mxu0 0.0
        %757 = vmatprep.subr.mxu0 0.0
        %758 = vmatpush1.msra.mxu0 0.0
        %759 = vmatprep.subr.mxu0 0.0
        %760 = vmatpush1.msra.mxu0 0.0
        %761 = vmatprep.subr.mxu0 0.0
        %762 = vmatpush1.msra.mxu0 0.0
        %763 = vmatprep.subr.mxu0 0.0
        %764 = vmatpush1.msra.mxu0 0.0
        %765 = vmatprep.subr.mxu0 0.0
        %766 = vmatpush1.msra.mxu0 0.0
        %767 = vmatprep.subr.mxu0 0.0
        %768 = vmatpush1.msra.mxu0 0.0
        %769 = vmatprep.subr.mxu0 0.0
        %770 = vmatpush1.msra.mxu0 0.0
        %771 = vmatprep.subr.mxu0 0.0
        %772 = vmatpush1.msra.mxu0 0.0
        %773 = vmatprep.mubr.f32.mxu0 0.0
        %774 = vmatmul.mubr.f32.gmra.mrb[0].mxu0 %v367
        %v775 = vpop.f32.mrb[0].mxu0
        %v776 = vadd.f32 0.0, %v775
        %v777 = vpop.f32.mrb[0].mxu0
        %v778 = vadd.f32 0.0, %v777
        %779 = vdwg.mxu0
        %v780 = vmul.f32 %v499, %v705
        %v781 = vmul.f32 %v501, %v707
        %v782 = vmul.f32 %v570, %v776
        %v783 = vmul.f32 %v572, %v778
        %v784 = vld [vmem:[#allocation8] sm:$0xff]
        %v785 = vld [vmem:[#allocation8 + $0x8] sm:$0xff]
        %v786 = vld [vmem:[#allocation8 + $0x10] sm:$0xff]
        %v787 = vld [vmem:[#allocation8 + $0x18] sm:$0xff]
        %v788 = vld [vmem:[#allocation8 + $0x20] sm:$0xff]
        %v789 = vld [vmem:[#allocation8 + $0x28] sm:$0xff]
        %v790 = vld [vmem:[#allocation8 + $0x30] sm:$0xff]
        %v791 = vld [vmem:[#allocation8 + $0x38] sm:$0xff]
        %v792 = vld [vmem:[#allocation8 + $0x40] sm:$0xff]
        %v793 = vld [vmem:[#allocation8 + $0x48] sm:$0xff]
        %v794 = vld [vmem:[#allocation8 + $0x50] sm:$0xff]
        %v795 = vld [vmem:[#allocation8 + $0x58] sm:$0xff]
        %v796 = vld [vmem:[#allocation8 + $0x60] sm:$0xff]
        %v797 = vld [vmem:[#allocation8 + $0x68] sm:$0xff]
        %v798 = vld [vmem:[#allocation8 + $0x70] sm:$0xff]
        %v799 = vld [vmem:[#allocation8 + $0x78] sm:$0xff]
        %v800 = vld [vmem:[#allocation8 + $0x80] sm:$0xff]
        %v801 = vld [vmem:[#allocation8 + $0x88] sm:$0xff]
        %v802 = vld [vmem:[#allocation8 + $0x90] sm:$0xff]
        %v803 = vld [vmem:[#allocation8 + $0x98] sm:$0xff]
        %v804 = vld [vmem:[#allocation8 + $0xa0] sm:$0xff]
        %v805 = vld [vmem:[#allocation8 + $0xa8] sm:$0xff]
        %v806 = vld [vmem:[#allocation8 + $0xb0] sm:$0xff]
        %v807 = vld [vmem:[#allocation8 + $0xb8] sm:$0xff]
        %v808 = vld [vmem:[#allocation8 + $0xc0] sm:$0xff]
        %v809 = vld [vmem:[#allocation8 + $0xc8] sm:$0xff]
        %v810 = vld [vmem:[#allocation8 + $0xd0] sm:$0xff]
        %v811 = vld [vmem:[#allocation8 + $0xd8] sm:$0xff]
        %v812 = vld [vmem:[#allocation8 + $0xe0] sm:$0xff]
        %v813 = vld [vmem:[#allocation8 + $0xe8] sm:$0xff]
        %v814 = vld [vmem:[#allocation8 + $0xf0] sm:$0xff]
        %v815 = vld [vmem:[#allocation8 + $0xf8] sm:$0xff]
        %v816 = vld [vmem:[#allocation8 + $0x100] sm:$0xff]
        %v817 = vld [vmem:[#allocation8 + $0x108] sm:$0xff]
        %v818 = vld [vmem:[#allocation8 + $0x110] sm:$0xff]
        %v819 = vld [vmem:[#allocation8 + $0x118] sm:$0xff]
        %v820 = vld [vmem:[#allocation8 + $0x120] sm:$0xff]
        %v821 = vld [vmem:[#allocation8 + $0x128] sm:$0xff]
        %v822 = vld [vmem:[#allocation8 + $0x130] sm:$0xff]
        %v823 = vld [vmem:[#allocation8 + $0x138] sm:$0xff]
        %v824 = vld [vmem:[#allocation8 + $0x140] sm:$0xff]
        %v825 = vld [vmem:[#allocation8 + $0x148] sm:$0xff]
        %v826 = vld [vmem:[#allocation8 + $0x150] sm:$0xff]
        %v827 = vld [vmem:[#allocation8 + $0x158] sm:$0xff]
        %v828 = vld [vmem:[#allocation8 + $0x160] sm:$0xff]
        %v829 = vld [vmem:[#allocation8 + $0x168] sm:$0xff]
        %v830 = vld [vmem:[#allocation8 + $0x170] sm:$0xff]
        %v831 = vld [vmem:[#allocation8 + $0x178] sm:$0xff]
        %v832 = vld [vmem:[#allocation8 + $0x180] sm:$0xff]
        %v833 = vld [vmem:[#allocation8 + $0x188] sm:$0xff]
        %v834 = vld [vmem:[#allocation8 + $0x190] sm:$0xff]
        %v835 = vld [vmem:[#allocation8 + $0x198] sm:$0xff]
        %v836 = vld [vmem:[#allocation8 + $0x1a0] sm:$0xff]
        %v837 = vld [vmem:[#allocation8 + $0x1a8] sm:$0xff]
        %v838 = vld [vmem:[#allocation8 + $0x1b0] sm:$0xff]
        %v839 = vld [vmem:[#allocation8 + $0x1b8] sm:$0xff]
        %v840 = vld [vmem:[#allocation8 + $0x1c0] sm:$0xff]
        %v841 = vld [vmem:[#allocation8 + $0x1c8] sm:$0xff]
        %v842 = vld [vmem:[#allocation8 + $0x1d0] sm:$0xff]
        %v843 = vld [vmem:[#allocation8 + $0x1d8] sm:$0xff]
        %v844 = vld [vmem:[#allocation8 + $0x1e0] sm:$0xff]
        %v845 = vld [vmem:[#allocation8 + $0x1e8] sm:$0xff]
        %v846 = vld [vmem:[#allocation8 + $0x1f0] sm:$0xff]
        %v847 = vld [vmem:[#allocation8 + $0x1f8] sm:$0xff]
        %v848 = vld [vmem:[#allocation10] sm:$0xff]
        %v849 = vld [vmem:[#allocation10 + $0x8] sm:$0xff]
        %v850 = vld [vmem:[#allocation10 + $0x10] sm:$0xff]
        %v851 = vld [vmem:[#allocation10 + $0x18] sm:$0xff]
        %v852 = vld [vmem:[#allocation10 + $0x20] sm:$0xff]
        %v853 = vld [vmem:[#allocation10 + $0x28] sm:$0xff]
        %v854 = vld [vmem:[#allocation10 + $0x30] sm:$0xff]
        %v855 = vld [vmem:[#allocation10 + $0x38] sm:$0xff]
        %v856 = vld [vmem:[#allocation10 + $0x40] sm:$0xff]
        %v857 = vld [vmem:[#allocation10 + $0x48] sm:$0xff]
        %v858 = vld [vmem:[#allocation10 + $0x50] sm:$0xff]
        %v859 = vld [vmem:[#allocation10 + $0x58] sm:$0xff]
        %v860 = vld [vmem:[#allocation10 + $0x60] sm:$0xff]
        %v861 = vld [vmem:[#allocation10 + $0x68] sm:$0xff]
        %v862 = vld [vmem:[#allocation10 + $0x70] sm:$0xff]
        %v863 = vld [vmem:[#allocation10 + $0x78] sm:$0xff]
        %864 = vmatprep.subr.mxu0 0.0
        %865 = vmatpush1.msra.mxu0 %v848
        %866 = vmatprep.subr.mxu0 0.0
        %867 = vmatpush1.msra.mxu0 %v849
        %868 = vmatprep.subr.mxu0 0.0
        %869 = vmatpush1.msra.mxu0 %v850
        %870 = vmatprep.subr.mxu0 0.0
        %871 = vmatpush1.msra.mxu0 %v851
        %872 = vmatprep.subr.mxu0 0.0
        %873 = vmatpush1.msra.mxu0 %v852
        %874 = vmatprep.subr.mxu0 0.0
        %875 = vmatpush1.msra.mxu0 %v853
        %876 = vmatprep.subr.mxu0 0.0
        %877 = vmatpush1.msra.mxu0 %v854
        %878 = vmatprep.subr.mxu0 0.0
        %879 = vmatpush1.msra.mxu0 %v855
        %880 = vmatprep.subr.mxu0 0.0
        %881 = vmatpush1.msra.mxu0 %v856
        %882 = vmatprep.subr.mxu0 0.0
        %883 = vmatpush1.msra.mxu0 %v857
        %884 = vmatprep.subr.mxu0 0.0
        %885 = vmatpush1.msra.mxu0 %v858
        %886 = vmatprep.subr.mxu0 0.0
        %887 = vmatpush1.msra.mxu0 %v859
        %888 = vmatprep.subr.mxu0 0.0
        %889 = vmatpush1.msra.mxu0 %v860
        %890 = vmatprep.subr.mxu0 0.0
        %891 = vmatpush1.msra.mxu0 %v861
        %892 = vmatprep.subr.mxu0 0.0
        %893 = vmatpush1.msra.mxu0 %v862
        %894 = vmatprep.subr.mxu0 0.0
        %895 = vmatpush1.msra.mxu0 %v863
        %896 = vmatprep.subr.mxu0 0.0
        %897 = vmatpush1.msra.mxu0 0.0
        %898 = vmatprep.subr.mxu0 0.0
        %899 = vmatpush1.msra.mxu0 0.0
        %900 = vmatprep.subr.mxu0 0.0
        %901 = vmatpush1.msra.mxu0 0.0
        %902 = vmatprep.subr.mxu0 0.0
        %903 = vmatpush1.msra.mxu0 0.0
        %904 = vmatprep.subr.mxu0 0.0
        %905 = vmatpush1.msra.mxu0 0.0
        %906 = vmatprep.subr.mxu0 0.0
        %907 = vmatpush1.msra.mxu0 0.0
        %908 = vmatprep.subr.mxu0 0.0
        %909 = vmatpush1.msra.mxu0 0.0
        %910 = vmatprep.subr.mxu0 0.0
        %911 = vmatpush1.msra.mxu0 0.0
        %912 = vmatprep.subr.mxu0 0.0
        %913 = vmatpush1.msra.mxu0 0.0
        %914 = vmatprep.subr.mxu0 0.0
        %915 = vmatpush1.msra.mxu0 0.0
        %916 = vmatprep.subr.mxu0 0.0
        %917 = vmatpush1.msra.mxu0 0.0
        %918 = vmatprep.subr.mxu0 0.0
        %919 = vmatpush1.msra.mxu0 0.0
        %920 = vmatprep.subr.mxu0 0.0
        %921 = vmatpush1.msra.mxu0 0.0
        %922 = vmatprep.subr.mxu0 0.0
        %923 = vmatpush1.msra.mxu0 0.0
        %924 = vmatprep.subr.mxu0 0.0
        %925 = vmatpush1.msra.mxu0 0.0
        %926 = vmatprep.subr.mxu0 0.0
        %927 = vmatpush1.msra.mxu0 0.0
        %928 = vmatprep.mubr.f32.mxu0 0.0
        %929 = vmatmul.mubr.f32.gmra.mrb[0].mxu0 %v367
        %v930 = vpop.f32.mrb[0].mxu0
        %v931 = vadd.f32 0.0, %v930
        %v932 = vpop.f32.mrb[0].mxu0
        %933 = vdwg.mxu0
        %934 = vmatprep.subr.mxu0 0.0
        %935 = vmatpush1.msra.mxu0 %v784
        %936 = vmatprep.subr.mxu0 0.0
        %937 = vmatpush1.msra.mxu0 %v785
        %938 = vmatprep.subr.mxu0 0.0
        %939 = vmatpush1.msra.mxu0 %v786
        %940 = vmatprep.subr.mxu0 0.0
        %941 = vmatpush1.msra.mxu0 %v787
        %942 = vmatprep.subr.mxu0 0.0
        %943 = vmatpush1.msra.mxu0 %v788
        %944 = vmatprep.subr.mxu0 0.0
        %945 = vmatpush1.msra.mxu0 %v789
        %946 = vmatprep.subr.mxu0 0.0
        %947 = vmatpush1.msra.mxu0 %v790
        %948 = vmatprep.subr.mxu0 0.0
        %949 = vmatpush1.msra.mxu0 %v791
        %950 = vmatprep.subr.mxu0 0.0
        %951 = vmatpush1.msra.mxu0 %v792
        %952 = vmatprep.subr.mxu0 0.0
        %953 = vmatpush1.msra.mxu0 %v793
        %954 = vmatprep.subr.mxu0 0.0
        %955 = vmatpush1.msra.mxu0 %v794
        %956 = vmatprep.subr.mxu0 0.0
        %957 = vmatpush1.msra.mxu0 %v795
        %958 = vmatprep.subr.mxu0 0.0
        %959 = vmatpush1.msra.mxu0 %v796
        %960 = vmatprep.subr.mxu0 0.0
        %961 = vmatpush1.msra.mxu0 %v797
        %962 = vmatprep.subr.mxu0 0.0
        %963 = vmatpush1.msra.mxu0 %v798
        %964 = vmatprep.subr.mxu0 0.0
        %965 = vmatpush1.msra.mxu0 %v799
        %966 = vmatprep.subr.mxu0 0.0
        %967 = vmatpush1.msra.mxu0 %v800
        %968 = vmatprep.subr.mxu0 0.0
        %969 = vmatpush1.msra.mxu0 %v801
        %970 = vmatprep.subr.mxu0 0.0
        %971 = vmatpush1.msra.mxu0 %v802
        %972 = vmatprep.subr.mxu0 0.0
        %973 = vmatpush1.msra.mxu0 %v803
        %974 = vmatprep.subr.mxu0 0.0
        %975 = vmatpush1.msra.mxu0 %v804
        %976 = vmatprep.subr.mxu0 0.0
        %977 = vmatpush1.msra.mxu0 %v805
        %978 = vmatprep.subr.mxu0 0.0
        %979 = vmatpush1.msra.mxu0 %v806
        %980 = vmatprep.subr.mxu0 0.0
        %981 = vmatpush1.msra.mxu0 %v807
        %982 = vmatprep.subr.mxu0 0.0
        %983 = vmatpush1.msra.mxu0 %v808
        %984 = vmatprep.subr.mxu0 0.0
        %985 = vmatpush1.msra.mxu0 %v809
        %986 = vmatprep.subr.mxu0 0.0
        %987 = vmatpush1.msra.mxu0 %v810
        %988 = vmatprep.subr.mxu0 0.0
        %989 = vmatpush1.msra.mxu0 %v811
        %990 = vmatprep.subr.mxu0 0.0
        %991 = vmatpush1.msra.mxu0 %v812
        %992 = vmatprep.subr.mxu0 0.0
        %993 = vmatpush1.msra.mxu0 %v813
        %994 = vmatprep.subr.mxu0 0.0
        %995 = vmatpush1.msra.mxu0 %v814
        %996 = vmatprep.subr.mxu0 0.0
        %997 = vmatpush1.msra.mxu0 %v815
        %998 = vmatprep.mubr.f32.mxu0 %v781
        %999 = vmatmul.mubr.f32.gmra.mrb[0].mxu0 %v780
        %v1000 = vpop.f32.mrb[0].mxu0
        %v1001 = vadd.f32 %v931, %v1000
        %v1002 = vpop.f32.mrb[0].mxu0
        %1003 = vdwg.mxu0
        %1004 = vmatprep.subr.mxu0 0.0
        %1005 = vmatpush1.msra.mxu0 %v816
        %1006 = vmatprep.subr.mxu0 0.0
        %1007 = vmatpush1.msra.mxu0 %v817
        %1008 = vmatprep.subr.mxu0 0.0
        %1009 = vmatpush1.msra.mxu0 %v818
        %1010 = vmatprep.subr.mxu0 0.0
        %1011 = vmatpush1.msra.mxu0 %v819
        %1012 = vmatprep.subr.mxu0 0.0
        %1013 = vmatpush1.msra.mxu0 %v820
        %1014 = vmatprep.subr.mxu0 0.0
        %1015 = vmatpush1.msra.mxu0 %v821
        %1016 = vmatprep.subr.mxu0 0.0
        %1017 = vmatpush1.msra.mxu0 %v822
        %1018 = vmatprep.subr.mxu0 0.0
        %1019 = vmatpush1.msra.mxu0 %v823
        %1020 = vmatprep.subr.mxu0 0.0
        %1021 = vmatpush1.msra.mxu0 %v824
        %1022 = vmatprep.subr.mxu0 0.0
        %1023 = vmatpush1.msra.mxu0 %v825
        %1024 = vmatprep.subr.mxu0 0.0
        %1025 = vmatpush1.msra.mxu0 %v826
        %1026 = vmatprep.subr.mxu0 0.0
        %1027 = vmatpush1.msra.mxu0 %v827
        %1028 = vmatprep.subr.mxu0 0.0
        %1029 = vmatpush1.msra.mxu0 %v828
        %1030 = vmatprep.subr.mxu0 0.0
        %1031 = vmatpush1.msra.mxu0 %v829
        %1032 = vmatprep.subr.mxu0 0.0
        %1033 = vmatpush1.msra.mxu0 %v830
        %1034 = vmatprep.subr.mxu0 0.0
        %1035 = vmatpush1.msra.mxu0 %v831
        %1036 = vmatprep.subr.mxu0 0.0
        %1037 = vmatpush1.msra.mxu0 %v832
        %1038 = vmatprep.subr.mxu0 0.0
        %1039 = vmatpush1.msra.mxu0 %v833
        %1040 = vmatprep.subr.mxu0 0.0
        %1041 = vmatpush1.msra.mxu0 %v834
        %1042 = vmatprep.subr.mxu0 0.0
        %1043 = vmatpush1.msra.mxu0 %v835
        %1044 = vmatprep.subr.mxu0 0.0
        %1045 = vmatpush1.msra.mxu0 %v836
        %1046 = vmatprep.subr.mxu0 0.0
        %1047 = vmatpush1.msra.mxu0 %v837
        %1048 = vmatprep.subr.mxu0 0.0
        %1049 = vmatpush1.msra.mxu0 %v838
        %1050 = vmatprep.subr.mxu0 0.0
        %1051 = vmatpush1.msra.mxu0 %v839
        %1052 = vmatprep.subr.mxu0 0.0
        %1053 = vmatpush1.msra.mxu0 %v840
        %1054 = vmatprep.subr.mxu0 0.0
        %1055 = vmatpush1.msra.mxu0 %v841
        %1056 = vmatprep.subr.mxu0 0.0
        %1057 = vmatpush1.msra.mxu0 %v842
        %1058 = vmatprep.subr.mxu0 0.0
        %1059 = vmatpush1.msra.mxu0 %v843
        %1060 = vmatprep.subr.mxu0 0.0
        %1061 = vmatpush1.msra.mxu0 %v844
        %1062 = vmatprep.subr.mxu0 0.0
        %1063 = vmatpush1.msra.mxu0 %v845
        %1064 = vmatprep.subr.mxu0 0.0
        %1065 = vmatpush1.msra.mxu0 %v846
        %1066 = vmatprep.subr.mxu0 0.0
        %1067 = vmatpush1.msra.mxu0 %v847
        %1068 = vmatprep.mubr.f32.mxu0 %v783
        %1069 = vmatmul.mubr.f32.gmra.mrb[0].mxu0 %v782
        %v1070 = vpop.f32.mrb[0].mxu0
        %v1071 = vadd.f32 %v1001, %v1070
        %v1072 = vpop.f32.mrb[0].mxu0
        %1073 = vdwg.mxu0
        %v1074 = vand.u32 2147483647, %v1071
        %vm1075 = vcmp.le.f32.partialorder %v1074, 0.7853982
        %vm1076 = vcmp.lt.s32.totalorder %v1071, 0
        %v1077 = vand.u32 %v1071, 2139095040
        %v1078 = vshrl.u32 %v1077, 23
        %v1079 = vsub.s32 %v1078, 127
        %v1080 = vand.u32 2147483647, %v1071
        %v1081 = vand.u32 %v1080, 8388607
        %v1082 = vor.u32 %v1081, 8388608
        %v1083 = vsub.s32 0, %v1082
        %v1084 = vadd.s32 %v1079, 1
        %vm1085 = vcmp.gt.s32.totalorder %v1084, 0
        %v1086 = vsel %vm1085, %v1084, 0
        %v1087 = vshrl.u32 %v1086, 5
        %v1088 = vand.u32 %v1086, 31
        %v1089 = vsub.s32 32, %v1088
        %v1090 = vshrl.u32 683565275, %v1089
        %v1091 = vshll.u32 683565275, %v1088
        %v1092 = vshrl.u32 2475754826, %v1089
        %v1093 = vor.u32 %v1091, %v1092
        %v1094 = vshll.u32 2475754826, %v1088
        %v1095 = vshrl.u32 2131351028, %v1089
        %v1096 = vor.u32 %v1094, %v1095
        %v1097 = vshll.u32 2131351028, %v1088
        %v1098 = vshrl.u32 2102212464, %v1089
        %v1099 = vor.u32 %v1097, %v1098
        %v1100 = vshll.u32 2102212464, %v1088
        %v1101 = vshrl.u32 920167782, %v1089
        %v1102 = vor.u32 %v1100, %v1101
        %v1103 = vshll.u32 920167782, %v1088
        %v1104 = vshrl.u32 1326507024, %v1089
        %v1105 = vor.u32 %v1103, %v1104
        %vm1106 = vcmp.lt.s32.totalorder %v1087, 1
        %vm1107 = vcmp.lt.s32.totalorder %v1087, 2
        %vm1108 = vcmp.lt.s32.totalorder %v1087, 3
        %vm1109 = vcmp.lt.s32.totalorder %v1087, 4
        %v1110 = vsel %vm1106, %v1090, %v1093
        %v1111 = vsel %vm1109, %v1099, 2102212464
        %v1112 = vsel %vm1108, %v1096, %v1111
        %v1113 = vsel %vm1107, %v1110, %v1112
        %v1114 = vsel %vm1106, %v1093, %v1096
        %v1115 = vsel %vm1109, %v1102, 920167782
        %v1116 = vsel %vm1108, %v1099, %v1115
        %v1117 = vsel %vm1107, %v1114, %v1116
        %v1118 = vsel %vm1106, %v1096, %v1099
        %v1119 = vsel %vm1109, %v1105, 1326507024
        %v1120 = vsel %vm1108, %v1102, %v1119
        %v1121 = vsel %vm1107, %v1118, %v1120
        %v1122 = vshll.u32 %v1082, 8
        %v1123 = vmul.u32.u64.compose %v1122, %v1121
        %v1124 = vextract.low.u32 %v1123
        %v1125 = vextract.high.u32 %v1123
        %v1126 = vmul.u32.u64.compose %v1122, %v1117
        %v1127 = vextract.low.u32 %v1126
        %v1128 = vextract.high.u32 %v1126
        %v1129 = vmul.u32 %v1122, %v1113
        %v1130 = vadd.s32 %v1125, %v1127
        %vm1131 = vc.u32 %v1125, %v1127
        %v1132 = vadd.s32 %v1128, 1
        %v1133 = vsel %vm1131, %v1132, %v1128
        %v1134 = vadd.s32 %v1129, %v1133
        %v1135 = vadd.s32 %v1134, 536870912
        %v1136 = vshrl.u32 %v1135, 30
        %v1137 = vshll.u32 %v1136, 30
        %v1138 = vsub.s32 %v1134, %v1137
        %vm1139 = vcmp.lt.s32.totalorder %v1138, 0
        %v1140 = vsub.s32 0, %v1138
        %v1141 = vsel %vm1139, %v1140, %v1138
        %v1142 = vclz %v1141
        %v1143 = vsub.s32 %v1142, 2
        %vm1144 = vcmp.gt.s32.totalorder 0, %v1143
        %v1145 = vsel %vm1144, 0, %v1143
        %v1146 = vsub.s32 32, %v1145
        %v1147 = vshll.u32 %v1138, %v1145
        %v1148 = vshrl.u32 %v1130, %v1146
        %v1149 = vor.u32 %v1147, %v1148
        %v1150 = vsub.s32 4294967266, %v1145
        %v1151 = vadd.s32 %v1150, 127
        %v1152 = vshll.u32 %v1151, 23
        %v1153 = vor.u32 4788187, %v1152
        %v1154 = vand.u32 2147483647, %v1153
        %v1156 = vcvt.s32.f32 %v1149
        %v1157 = vmul.f32 %v1156, %v1154
        %v1158 = vxor.u32 %v1157, 2147483648
        %v1159 = vsel %vm1076, %v1158, %v1157
        %v1160 = vsub.s32 4, %v1136
        %v1161 = vsel %vm1076, %v1160, %v1136
        %v1162 = vsel %vm1075, %v1071, %v1159
        %v1163 = vsel %vm1075, 0, %v1161
        %v1164 = vcosq.f32.pop %v1162
        %v1165 = vsinq.f32.pop %v1162
        %vm1166 = vweird.f32 %v1071
        %v1167 = vadd.s32 %v1163, 3
        %v1168 = vand.u32 %v1167, 3
        %vm1169 = vcmp.lt.s32.totalorder %v1168, 2
        %vm1170 = vcmp.eq.s32.totalorder %v1168, 0
        %v1171 = vxor.u32 %v1165, 2147483648
        %v1172 = vsel %vm1170, %v1164, %v1171
        %vm1173 = vcmp.eq.s32.totalorder %v1168, 2
        %v1174 = vxor.u32 %v1164, 2147483648
        %v1175 = vsel %vm1173, %v1174, %v1165
        %v1176 = vsel %vm1169, %v1172, %v1175
        %v1177 = vsel %vm1166, nan, %v1176
        %v1178 = vand.u32 2147483647, %v1071
        %vm1179 = vcmp.le.f32.partialorder %v1178, 0.7853982
        %vm1180 = vcmp.lt.s32.totalorder %v1071, 0
        %v1181 = vand.u32 %v1071, 2139095040
        %v1182 = vshrl.u32 %v1181, 23
        %v1183 = vsub.s32 %v1182, 127
        %v1184 = vand.u32 2147483647, %v1071
        %v1185 = vand.u32 %v1184, 8388607
        %v1186 = vor.u32 %v1185, 8388608
        %v1187 = vsub.s32 0, %v1186
        %v1188 = vadd.s32 %v1183, 1
        %vm1189 = vcmp.gt.s32.totalorder %v1188, 0
        %v1190 = vsel %vm1189, %v1188, 0
        %v1191 = vshrl.u32 %v1190, 5
        %v1192 = vand.u32 %v1190, 31
        %v1193 = vsub.s32 32, %v1192
        %v1194 = vshrl.u32 683565275, %v1193
        %v1195 = vshll.u32 683565275, %v1192
        %v1196 = vshrl.u32 2475754826, %v1193
        %v1197 = vor.u32 %v1195, %v1196
        %v1198 = vshll.u32 2475754826, %v1192
        %v1199 = vshrl.u32 2131351028, %v1193
        %v1200 = vor.u32 %v1198, %v1199
        %v1201 = vshll.u32 2131351028, %v1192
        %v1202 = vshrl.u32 2102212464, %v1193
        %v1203 = vor.u32 %v1201, %v1202
        %v1204 = vshll.u32 2102212464, %v1192
        %v1205 = vshrl.u32 920167782, %v1193
        %v1206 = vor.u32 %v1204, %v1205
        %v1207 = vshll.u32 920167782, %v1192
        %v1208 = vshrl.u32 1326507024, %v1193
        %v1209 = vor.u32 %v1207, %v1208
        %vm1210 = vcmp.lt.s32.totalorder %v1191, 1
        %vm1211 = vcmp.lt.s32.totalorder %v1191, 2
        %vm1212 = vcmp.lt.s32.totalorder %v1191, 3
        %vm1213 = vcmp.lt.s32.totalorder %v1191, 4
        %v1214 = vsel %vm1210, %v1194, %v1197
        %v1215 = vsel %vm1213, %v1203, 2102212464
        %v1216 = vsel %vm1212, %v1200, %v1215
        %v1217 = vsel %vm1211, %v1214, %v1216
        %v1218 = vsel %vm1210, %v1197, %v1200
        %v1219 = vsel %vm1213, %v1206, 920167782
        %v1220 = vsel %vm1212, %v1203, %v1219
        %v1221 = vsel %vm1211, %v1218, %v1220
        %v1222 = vsel %vm1210, %v1200, %v1203
        %v1223 = vsel %vm1213, %v1209, 1326507024
        %v1224 = vsel %vm1212, %v1206, %v1223
        %v1225 = vsel %vm1211, %v1222, %v1224
        %v1226 = vshll.u32 %v1186, 8
        %v1227 = vmul.u32.u64.compose %v1226, %v1225
        %v1228 = vextract.low.u32 %v1227
        %v1229 = vextract.high.u32 %v1227
        %v1230 = vmul.u32.u64.compose %v1226, %v1221
        %v1231 = vextract.low.u32 %v1230
        %v1232 = vextract.high.u32 %v1230
        %v1233 = vmul.u32 %v1226, %v1217
        %v1234 = vadd.s32 %v1229, %v1231
        %vm1235 = vc.u32 %v1229, %v1231
        %v1236 = vadd.s32 %v1232, 1
        %v1237 = vsel %vm1235, %v1236, %v1232
        %v1238 = vadd.s32 %v1233, %v1237
        %v1239 = vadd.s32 %v1238, 536870912
        %v1240 = vshrl.u32 %v1239, 30
        %v1241 = vshll.u32 %v1240, 30
        %v1242 = vsub.s32 %v1238, %v1241
        %vm1243 = vcmp.lt.s32.totalorder %v1242, 0
        %v1244 = vsub.s32 0, %v1242
        %v1245 = vsel %vm1243, %v1244, %v1242
        %v1246 = vclz %v1245
        %v1247 = vsub.s32 %v1246, 2
        %vm1248 = vcmp.gt.s32.totalorder 0, %v1247
        %v1249 = vsel %vm1248, 0, %v1247
        %v1250 = vsub.s32 32, %v1249
        %v1251 = vshll.u32 %v1242, %v1249
        %v1252 = vshrl.u32 %v1234, %v1250
        %v1253 = vor.u32 %v1251, %v1252
        %v1254 = vsub.s32 4294967266, %v1249
        %v1255 = vadd.s32 %v1254, 127
        %v1256 = vshll.u32 %v1255, 23
        %v1257 = vor.u32 4788187, %v1256
        %v1258 = vand.u32 2147483647, %v1257
        %v1260 = vcvt.s32.f32 %v1253
        %v1261 = vmul.f32 %v1260, %v1258
        %v1262 = vxor.u32 %v1261, 2147483648
        %v1263 = vsel %vm1180, %v1262, %v1261
        %v1264 = vsub.s32 4, %v1240
        %v1265 = vsel %vm1180, %v1264, %v1240
        %v1266 = vsel %vm1179, %v1071, %v1263
        %v1267 = vsel %vm1179, 0, %v1265
        %v1268 = vcosq.f32.pop %v1266
        %v1269 = vsinq.f32.pop %v1266
        %vm1270 = vweird.f32 %v1071
        %v1271 = vand.u32 %v1267, 3
        %vm1272 = vcmp.lt.s32.totalorder %v1271, 2
        %vm1273 = vcmp.eq.s32.totalorder %v1271, 0
        %v1274 = vxor.u32 %v1269, 2147483648
        %v1275 = vsel %vm1273, %v1268, %v1274
        %vm1276 = vcmp.eq.s32.totalorder %v1271, 2
        %v1277 = vxor.u32 %v1268, 2147483648
        %v1278 = vsel %vm1276, %v1277, %v1269
        %v1279 = vsel %vm1272, %v1275, %v1278
        %v1280 = vsel %vm1270, nan, %v1279
        %v1281 = vmul.f32 %v1177, 2.0
        %v1282 = vmul.f32 %v1281, %v1280
        %v1283 = vmul.f32 %v1281, %v1177
        %v1284 = vsub.f32 1.0, %v1283
        %v1285 = vmul.f32 %v1282, 2.0
        %v1286 = vmul.f32 %v1285, %v1284
        %v1287 = vmul.f32 %v1285, %v1282
        %v1288 = vsub.f32 1.0, %v1287
        %v1289 = vld [vmem:[#allocation11] sm:$0xff]
        %v1290 = vld [vmem:[#allocation11 + $0x8] sm:$0xff]
        %v1291 = vld [vmem:[#allocation11 + $0x10] sm:$0xff]
        %v1292 = vld [vmem:[#allocation11 + $0x18] sm:$0xff]
        %v1293 = vld [vmem:[#allocation11 + $0x20] sm:$0xff]
        %v1294 = vld [vmem:[#allocation11 + $0x28] sm:$0xff]
        %v1295 = vld [vmem:[#allocation11 + $0x30] sm:$0xff]
        %v1296 = vld [vmem:[#allocation11 + $0x38] sm:$0xff]
        %v1297 = vld [vmem:[#allocation11 + $0x40] sm:$0xff]
        %v1298 = vld [vmem:[#allocation11 + $0x48] sm:$0xff]
        %v1299 = vld [vmem:[#allocation11 + $0x50] sm:$0xff]
        %v1300 = vld [vmem:[#allocation11 + $0x58] sm:$0xff]
        %v1301 = vld [vmem:[#allocation11 + $0x60] sm:$0xff]
        %v1302 = vld [vmem:[#allocation11 + $0x68] sm:$0xff]
        %v1303 = vld [vmem:[#allocation11 + $0x70] sm:$0xff]
        %v1304 = vld [vmem:[#allocation11 + $0x78] sm:$0xff]
        %s1305 = scalar_lea.vmem [#allocation11], 128
        %v1306 = vld [vmem:[%s1305] sm:$0xff]
        %v1307 = vld [vmem:[%s1305 + $0x8] sm:$0xff]
        %v1308 = vld [vmem:[%s1305 + $0x10] sm:$0xff]
        %v1309 = vld [vmem:[%s1305 + $0x18] sm:$0xff]
        %v1310 = vld [vmem:[%s1305 + $0x20] sm:$0xff]
        %v1311 = vld [vmem:[%s1305 + $0x28] sm:$0xff]
        %v1312 = vld [vmem:[%s1305 + $0x30] sm:$0xff]
        %v1313 = vld [vmem:[%s1305 + $0x38] sm:$0xff]
        %v1314 = vld [vmem:[%s1305 + $0x40] sm:$0xff]
        %v1315 = vld [vmem:[%s1305 + $0x48] sm:$0xff]
        %v1316 = vld [vmem:[%s1305 + $0x50] sm:$0xff]
        %v1317 = vld [vmem:[%s1305 + $0x58] sm:$0xff]
        %v1318 = vld [vmem:[%s1305 + $0x60] sm:$0xff]
        %v1319 = vld [vmem:[%s1305 + $0x68] sm:$0xff]
        %v1320 = vld [vmem:[%s1305 + $0x70] sm:$0xff]
        %v1321 = vld [vmem:[%s1305 + $0x78] sm:$0xff]
        %1322 = vmatprep.subr.mxu0 0.0
        %1323 = vmatpush1.msra.mxu0 %v1306
        %1324 = vmatprep.subr.mxu0 0.0
        %1325 = vmatpush1.msra.mxu0 %v1307
        %1326 = vmatprep.subr.mxu0 0.0
        %1327 = vmatpush1.msra.mxu0 %v1308
        %1328 = vmatprep.subr.mxu0 0.0
        %1329 = vmatpush1.msra.mxu0 %v1309
        %1330 = vmatprep.subr.mxu0 0.0
        %1331 = vmatpush1.msra.mxu0 %v1310
        %1332 = vmatprep.subr.mxu0 0.0
        %1333 = vmatpush1.msra.mxu0 %v1311
        %1334 = vmatprep.subr.mxu0 0.0
        %1335 = vmatpush1.msra.mxu0 %v1312
        %1336 = vmatprep.subr.mxu0 0.0
        %1337 = vmatpush1.msra.mxu0 %v1313
        %1338 = vmatprep.subr.mxu0 0.0
        %1339 = vmatpush1.msra.mxu0 %v1314
        %1340 = vmatprep.subr.mxu0 0.0
        %1341 = vmatpush1.msra.mxu0 %v1315
        %1342 = vmatprep.subr.mxu0 0.0
        %1343 = vmatpush1.msra.mxu0 %v1316
        %1344 = vmatprep.subr.mxu0 0.0
        %1345 = vmatpush1.msra.mxu0 %v1317
        %1346 = vmatprep.subr.mxu0 0.0
        %1347 = vmatpush1.msra.mxu0 %v1318
        %1348 = vmatprep.subr.mxu0 0.0
        %1349 = vmatpush1.msra.mxu0 %v1319
        %1350 = vmatprep.subr.mxu0 0.0
        %1351 = vmatpush1.msra.mxu0 %v1320
        %1352 = vmatprep.subr.mxu0 0.0
        %1353 = vmatpush1.msra.mxu0 %v1321
        %1354 = vmatprep.subr.mxu0 0.0
        %1355 = vmatpush1.msra.mxu0 0.0
        %1356 = vmatprep.subr.mxu0 0.0
        %1357 = vmatpush1.msra.mxu0 0.0
        %1358 = vmatprep.subr.mxu0 0.0
        %1359 = vmatpush1.msra.mxu0 0.0
        %1360 = vmatprep.subr.mxu0 0.0
        %1361 = vmatpush1.msra.mxu0 0.0
        %1362 = vmatprep.subr.mxu0 0.0
        %1363 = vmatpush1.msra.mxu0 0.0
        %1364 = vmatprep.subr.mxu0 0.0
        %1365 = vmatpush1.msra.mxu0 0.0
        %1366 = vmatprep.subr.mxu0 0.0
        %1367 = vmatpush1.msra.mxu0 0.0
        %1368 = vmatprep.subr.mxu0 0.0
        %1369 = vmatpush1.msra.mxu0 0.0
        %1370 = vmatprep.subr.mxu0 0.0
        %1371 = vmatpush1.msra.mxu0 0.0
        %1372 = vmatprep.subr.mxu0 0.0
        %1373 = vmatpush1.msra.mxu0 0.0
        %1374 = vmatprep.subr.mxu0 0.0
        %1375 = vmatpush1.msra.mxu0 0.0
        %1376 = vmatprep.subr.mxu0 0.0
        %1377 = vmatpush1.msra.mxu0 0.0
        %1378 = vmatprep.subr.mxu0 0.0
        %1379 = vmatpush1.msra.mxu0 0.0
        %1380 = vmatprep.subr.mxu0 0.0
        %1381 = vmatpush1.msra.mxu0 0.0
        %1382 = vmatprep.subr.mxu0 0.0
        %1383 = vmatpush1.msra.mxu0 0.0
        %1384 = vmatprep.subr.mxu0 0.0
        %1385 = vmatpush1.msra.mxu0 0.0
        %1386 = vmatprep.mubr.f32.mxu0 0.0
        %1387 = vmatmul.mubr.f32.gmra.mrb[0].mxu0 %v1280
        %v1388 = vpop.f32.mrb[0].mxu0
        %v1389 = vadd.f32 0.0, %v1388
        %v1390 = vpop.f32.mrb[0].mxu0
        %1391 = vdwg.mxu0
        %1392 = vmatprep.subr.mxu0 0.0
        %1393 = vmatpush1.msra.mxu0 %v1289
        %1394 = vmatprep.subr.mxu0 0.0
        %1395 = vmatpush1.msra.mxu0 %v1290
        %1396 = vmatprep.subr.mxu0 0.0
        %1397 = vmatpush1.msra.mxu0 %v1291
        %1398 = vmatprep.subr.mxu0 0.0
        %1399 = vmatpush1.msra.mxu0 %v1292
        %1400 = vmatprep.subr.mxu0 0.0
        %1401 = vmatpush1.msra.mxu0 %v1293
        %1402 = vmatprep.subr.mxu0 0.0
        %1403 = vmatpush1.msra.mxu0 %v1294
        %1404 = vmatprep.subr.mxu0 0.0
        %1405 = vmatpush1.msra.mxu0 %v1295
        %1406 = vmatprep.subr.mxu0 0.0
        %1407 = vmatpush1.msra.mxu0 %v1296
        %1408 = vmatprep.subr.mxu0 0.0
        %1409 = vmatpush1.msra.mxu0 %v1297
        %1410 = vmatprep.subr.mxu0 0.0
        %1411 = vmatpush1.msra.mxu0 %v1298
        %1412 = vmatprep.subr.mxu0 0.0
        %1413 = vmatpush1.msra.mxu0 %v1299
        %1414 = vmatprep.subr.mxu0 0.0
        %1415 = vmatpush1.msra.mxu0 %v1300
        %1416 = vmatprep.subr.mxu0 0.0
        %1417 = vmatpush1.msra.mxu0 %v1301
        %1418 = vmatprep.subr.mxu0 0.0
        %1419 = vmatpush1.msra.mxu0 %v1302
        %1420 = vmatprep.subr.mxu0 0.0
        %1421 = vmatpush1.msra.mxu0 %v1303
        %1422 = vmatprep.subr.mxu0 0.0
        %1423 = vmatpush1.msra.mxu0 %v1304
        %1424 = vmatprep.subr.mxu0 0.0
        %1425 = vmatpush1.msra.mxu0 0.0
        %1426 = vmatprep.subr.mxu0 0.0
        %1427 = vmatpush1.msra.mxu0 0.0
        %1428 = vmatprep.subr.mxu0 0.0
        %1429 = vmatpush1.msra.mxu0 0.0
        %1430 = vmatprep.subr.mxu0 0.0
        %1431 = vmatpush1.msra.mxu0 0.0
        %1432 = vmatprep.subr.mxu0 0.0
        %1433 = vmatpush1.msra.mxu0 0.0
        %1434 = vmatprep.subr.mxu0 0.0
        %1435 = vmatpush1.msra.mxu0 0.0
        %1436 = vmatprep.subr.mxu0 0.0
        %1437 = vmatpush1.msra.mxu0 0.0
        %1438 = vmatprep.subr.mxu0 0.0
        %1439 = vmatpush1.msra.mxu0 0.0
        %1440 = vmatprep.subr.mxu0 0.0
        %1441 = vmatpush1.msra.mxu0 0.0
        %1442 = vmatprep.subr.mxu0 0.0
        %1443 = vmatpush1.msra.mxu0 0.0
        %1444 = vmatprep.subr.mxu0 0.0
        %1445 = vmatpush1.msra.mxu0 0.0
        %1446 = vmatprep.subr.mxu0 0.0
        %1447 = vmatpush1.msra.mxu0 0.0
        %1448 = vmatprep.subr.mxu0 0.0
        %1449 = vmatpush1.msra.mxu0 0.0
        %1450 = vmatprep.subr.mxu0 0.0
        %1451 = vmatpush1.msra.mxu0 0.0
        %1452 = vmatprep.subr.mxu0 0.0
        %1453 = vmatpush1.msra.mxu0 0.0
        %1454 = vmatprep.subr.mxu0 0.0
        %1455 = vmatpush1.msra.mxu0 0.0
        %1456 = vmatprep.mubr.f32.mxu0 0.0
        %1457 = vmatmul.mubr.f32.gmra.mrb[0].mxu0 %v1177
        %v1458 = vpop.f32.mrb[0].mxu0
        %v1459 = vadd.f32 %v1389, %v1458
        %v1460 = vpop.f32.mrb[0].mxu0
        %1461 = vdwg.mxu0
        %s1462 = scalar_lea.vmem [#allocation11], 256
        %v1463 = vld [vmem:[%s1462] sm:$0xff]
        %v1464 = vld [vmem:[%s1462 + $0x8] sm:$0xff]
        %v1465 = vld [vmem:[%s1462 + $0x10] sm:$0xff]
        %v1466 = vld [vmem:[%s1462 + $0x18] sm:$0xff]
        %v1467 = vld [vmem:[%s1462 + $0x20] sm:$0xff]
        %v1468 = vld [vmem:[%s1462 + $0x28] sm:$0xff]
        %v1469 = vld [vmem:[%s1462 + $0x30] sm:$0xff]
        %v1470 = vld [vmem:[%s1462 + $0x38] sm:$0xff]
        %v1471 = vld [vmem:[%s1462 + $0x40] sm:$0xff]
        %v1472 = vld [vmem:[%s1462 + $0x48] sm:$0xff]
        %v1473 = vld [vmem:[%s1462 + $0x50] sm:$0xff]
        %v1474 = vld [vmem:[%s1462 + $0x58] sm:$0xff]
        %v1475 = vld [vmem:[%s1462 + $0x60] sm:$0xff]
        %v1476 = vld [vmem:[%s1462 + $0x68] sm:$0xff]
        %v1477 = vld [vmem:[%s1462 + $0x70] sm:$0xff]
        %v1478 = vld [vmem:[%s1462 + $0x78] sm:$0xff]
        %1479 = vmatprep.subr.mxu0 0.0
        %1480 = vmatpush1.msra.mxu0 %v1463
        %1481 = vmatprep.subr.mxu0 0.0
        %1482 = vmatpush1.msra.mxu0 %v1464
        %1483 = vmatprep.subr.mxu0 0.0
        %1484 = vmatpush1.msra.mxu0 %v1465
        %1485 = vmatprep.subr.mxu0 0.0
        %1486 = vmatpush1.msra.mxu0 %v1466
        %1487 = vmatprep.subr.mxu0 0.0
        %1488 = vmatpush1.msra.mxu0 %v1467
        %1489 = vmatprep.subr.mxu0 0.0
        %1490 = vmatpush1.msra.mxu0 %v1468
        %1491 = vmatprep.subr.mxu0 0.0
        %1492 = vmatpush1.msra.mxu0 %v1469
        %1493 = vmatprep.subr.mxu0 0.0
        %1494 = vmatpush1.msra.mxu0 %v1470
        %1495 = vmatprep.subr.mxu0 0.0
        %1496 = vmatpush1.msra.mxu0 %v1471
        %1497 = vmatprep.subr.mxu0 0.0
        %1498 = vmatpush1.msra.mxu0 %v1472
        %1499 = vmatprep.subr.mxu0 0.0
        %1500 = vmatpush1.msra.mxu0 %v1473
        %1501 = vmatprep.subr.mxu0 0.0
        %1502 = vmatpush1.msra.mxu0 %v1474
        %1503 = vmatprep.subr.mxu0 0.0
        %1504 = vmatpush1.msra.mxu0 %v1475
        %1505 = vmatprep.subr.mxu0 0.0
        %1506 = vmatpush1.msra.mxu0 %v1476
        %1507 = vmatprep.subr.mxu0 0.0
        %1508 = vmatpush1.msra.mxu0 %v1477
        %1509 = vmatprep.subr.mxu0 0.0
        %1510 = vmatpush1.msra.mxu0 %v1478
        %1511 = vmatprep.subr.mxu0 0.0
        %1512 = vmatpush1.msra.mxu0 0.0
        %1513 = vmatprep.subr.mxu0 0.0
        %1514 = vmatpush1.msra.mxu0 0.0
        %1515 = vmatprep.subr.mxu0 0.0
        %1516 = vmatpush1.msra.mxu0 0.0
        %1517 = vmatprep.subr.mxu0 0.0
        %1518 = vmatpush1.msra.mxu0 0.0
        %1519 = vmatprep.subr.mxu0 0.0
        %1520 = vmatpush1.msra.mxu0 0.0
        %1521 = vmatprep.subr.mxu0 0.0
        %1522 = vmatpush1.msra.mxu0 0.0
        %1523 = vmatprep.subr.mxu0 0.0
        %1524 = vmatpush1.msra.mxu0 0.0
        %1525 = vmatprep.subr.mxu0 0.0
        %1526 = vmatpush1.msra.mxu0 0.0
        %1527 = vmatprep.subr.mxu0 0.0
        %1528 = vmatpush1.msra.mxu0 0.0
        %1529 = vmatprep.subr.mxu0 0.0
        %1530 = vmatpush1.msra.mxu0 0.0
        %1531 = vmatprep.subr.mxu0 0.0
        %1532 = vmatpush1.msra.mxu0 0.0
        %1533 = vmatprep.subr.mxu0 0.0
        %1534 = vmatpush1.msra.mxu0 0.0
        %1535 = vmatprep.subr.mxu0 0.0
        %1536 = vmatpush1.msra.mxu0 0.0
        %1537 = vmatprep.subr.mxu0 0.0
        %1538 = vmatpush1.msra.mxu0 0.0
        %1539 = vmatprep.subr.mxu0 0.0
        %1540 = vmatpush1.msra.mxu0 0.0
        %1541 = vmatprep.subr.mxu0 0.0
        %1542 = vmatpush1.msra.mxu0 0.0
        %1543 = vmatprep.mubr.f32.mxu0 0.0
        %1544 = vmatmul.mubr.f32.gmra.mrb[0].mxu0 %v1282
        %v1545 = vpop.f32.mrb[0].mxu0
        %v1546 = vadd.f32 0.0, %v1545
        %v1547 = vpop.f32.mrb[0].mxu0
        %1548 = vdwg.mxu0
        %v1549 = vadd.f32 %v1459, %v1546
        %s1550 = scalar_lea.vmem [#allocation11], 384
        %v1551 = vld [vmem:[%s1550] sm:$0xff]
        %v1552 = vld [vmem:[%s1550 + $0x8] sm:$0xff]
        %v1553 = vld [vmem:[%s1550 + $0x10] sm:$0xff]
        %v1554 = vld [vmem:[%s1550 + $0x18] sm:$0xff]
        %v1555 = vld [vmem:[%s1550 + $0x20] sm:$0xff]
        %v1556 = vld [vmem:[%s1550 + $0x28] sm:$0xff]
        %v1557 = vld [vmem:[%s1550 + $0x30] sm:$0xff]
        %v1558 = vld [vmem:[%s1550 + $0x38] sm:$0xff]
        %v1559 = vld [vmem:[%s1550 + $0x40] sm:$0xff]
        %v1560 = vld [vmem:[%s1550 + $0x48] sm:$0xff]
        %v1561 = vld [vmem:[%s1550 + $0x50] sm:$0xff]
        %v1562 = vld [vmem:[%s1550 + $0x58] sm:$0xff]
        %v1563 = vld [vmem:[%s1550 + $0x60] sm:$0xff]
        %v1564 = vld [vmem:[%s1550 + $0x68] sm:$0xff]
        %v1565 = vld [vmem:[%s1550 + $0x70] sm:$0xff]
        %v1566 = vld [vmem:[%s1550 + $0x78] sm:$0xff]
        %1567 = vmatprep.subr.mxu0 0.0
        %1568 = vmatpush1.msra.mxu0 %v1551
        %1569 = vmatprep.subr.mxu0 0.0
        %1570 = vmatpush1.msra.mxu0 %v1552
        %1571 = vmatprep.subr.mxu0 0.0
        %1572 = vmatpush1.msra.mxu0 %v1553
        %1573 = vmatprep.subr.mxu0 0.0
        %1574 = vmatpush1.msra.mxu0 %v1554
        %1575 = vmatprep.subr.mxu0 0.0
        %1576 = vmatpush1.msra.mxu0 %v1555
        %1577 = vmatprep.subr.mxu0 0.0
        %1578 = vmatpush1.msra.mxu0 %v1556
        %1579 = vmatprep.subr.mxu0 0.0
        %1580 = vmatpush1.msra.mxu0 %v1557
        %1581 = vmatprep.subr.mxu0 0.0
        %1582 = vmatpush1.msra.mxu0 %v1558
        %1583 = vmatprep.subr.mxu0 0.0
        %1584 = vmatpush1.msra.mxu0 %v1559
        %1585 = vmatprep.subr.mxu0 0.0
        %1586 = vmatpush1.msra.mxu0 %v1560
        %1587 = vmatprep.subr.mxu0 0.0
        %1588 = vmatpush1.msra.mxu0 %v1561
        %1589 = vmatprep.subr.mxu0 0.0
        %1590 = vmatpush1.msra.mxu0 %v1562
        %1591 = vmatprep.subr.mxu0 0.0
        %1592 = vmatpush1.msra.mxu0 %v1563
        %1593 = vmatprep.subr.mxu0 0.0
        %1594 = vmatpush1.msra.mxu0 %v1564
        %1595 = vmatprep.subr.mxu0 0.0
        %1596 = vmatpush1.msra.mxu0 %v1565
        %1597 = vmatprep.subr.mxu0 0.0
        %1598 = vmatpush1.msra.mxu0 %v1566
        %1599 = vmatprep.subr.mxu0 0.0
        %1600 = vmatpush1.msra.mxu0 0.0
        %1601 = vmatprep.subr.mxu0 0.0
        %1602 = vmatpush1.msra.mxu0 0.0
        %1603 = vmatprep.subr.mxu0 0.0
        %1604 = vmatpush1.msra.mxu0 0.0
        %1605 = vmatprep.subr.mxu0 0.0
        %1606 = vmatpush1.msra.mxu0 0.0
        %1607 = vmatprep.subr.mxu0 0.0
        %1608 = vmatpush1.msra.mxu0 0.0
        %1609 = vmatprep.subr.mxu0 0.0
        %1610 = vmatpush1.msra.mxu0 0.0
        %1611 = vmatprep.subr.mxu0 0.0
        %1612 = vmatpush1.msra.mxu0 0.0
        %1613 = vmatprep.subr.mxu0 0.0
        %1614 = vmatpush1.msra.mxu0 0.0
        %1615 = vmatprep.subr.mxu0 0.0
        %1616 = vmatpush1.msra.mxu0 0.0
        %1617 = vmatprep.subr.mxu0 0.0
        %1618 = vmatpush1.msra.mxu0 0.0
        %1619 = vmatprep.subr.mxu0 0.0
        %1620 = vmatpush1.msra.mxu0 0.0
        %1621 = vmatprep.subr.mxu0 0.0
        %1622 = vmatpush1.msra.mxu0 0.0
        %1623 = vmatprep.subr.mxu0 0.0
        %1624 = vmatpush1.msra.mxu0 0.0
        %1625 = vmatprep.subr.mxu0 0.0
        %1626 = vmatpush1.msra.mxu0 0.0
        %1627 = vmatprep.subr.mxu0 0.0
        %1628 = vmatpush1.msra.mxu0 0.0
        %1629 = vmatprep.subr.mxu0 0.0
        %1630 = vmatpush1.msra.mxu0 0.0
        %1631 = vmatprep.mubr.f32.mxu0 0.0
        %1632 = vmatmul.mubr.f32.gmra.mrb[0].mxu0 %v1284
        %v1633 = vpop.f32.mrb[0].mxu0
        %v1634 = vadd.f32 0.0, %v1633
        %v1635 = vpop.f32.mrb[0].mxu0
        %1636 = vdwg.mxu0
        %v1637 = vadd.f32 %v1549, %v1634
        %s1638 = scalar_lea.vmem [#allocation11], 512
        %v1639 = vld [vmem:[%s1638] sm:$0xff]
        %v1640 = vld [vmem:[%s1638 + $0x8] sm:$0xff]
        %v1641 = vld [vmem:[%s1638 + $0x10] sm:$0xff]
        %v1642 = vld [vmem:[%s1638 + $0x18] sm:$0xff]
        %v1643 = vld [vmem:[%s1638 + $0x20] sm:$0xff]
        %v1644 = vld [vmem:[%s1638 + $0x28] sm:$0xff]
        %v1645 = vld [vmem:[%s1638 + $0x30] sm:$0xff]
        %v1646 = vld [vmem:[%s1638 + $0x38] sm:$0xff]
        %v1647 = vld [vmem:[%s1638 + $0x40] sm:$0xff]
        %v1648 = vld [vmem:[%s1638 + $0x48] sm:$0xff]
        %v1649 = vld [vmem:[%s1638 + $0x50] sm:$0xff]
        %v1650 = vld [vmem:[%s1638 + $0x58] sm:$0xff]
        %v1651 = vld [vmem:[%s1638 + $0x60] sm:$0xff]
        %v1652 = vld [vmem:[%s1638 + $0x68] sm:$0xff]
        %v1653 = vld [vmem:[%s1638 + $0x70] sm:$0xff]
        %v1654 = vld [vmem:[%s1638 + $0x78] sm:$0xff]
        %1655 = vmatprep.subr.mxu0 0.0
        %1656 = vmatpush1.msra.mxu0 %v1639
        %1657 = vmatprep.subr.mxu0 0.0
        %1658 = vmatpush1.msra.mxu0 %v1640
        %1659 = vmatprep.subr.mxu0 0.0
        %1660 = vmatpush1.msra.mxu0 %v1641
        %1661 = vmatprep.subr.mxu0 0.0
        %1662 = vmatpush1.msra.mxu0 %v1642
        %1663 = vmatprep.subr.mxu0 0.0
        %1664 = vmatpush1.msra.mxu0 %v1643
        %1665 = vmatprep.subr.mxu0 0.0
        %1666 = vmatpush1.msra.mxu0 %v1644
        %1667 = vmatprep.subr.mxu0 0.0
        %1668 = vmatpush1.msra.mxu0 %v1645
        %1669 = vmatprep.subr.mxu0 0.0
        %1670 = vmatpush1.msra.mxu0 %v1646
        %1671 = vmatprep.subr.mxu0 0.0
        %1672 = vmatpush1.msra.mxu0 %v1647
        %1673 = vmatprep.subr.mxu0 0.0
        %1674 = vmatpush1.msra.mxu0 %v1648
        %1675 = vmatprep.subr.mxu0 0.0
        %1676 = vmatpush1.msra.mxu0 %v1649
        %1677 = vmatprep.subr.mxu0 0.0
        %1678 = vmatpush1.msra.mxu0 %v1650
        %1679 = vmatprep.subr.mxu0 0.0
        %1680 = vmatpush1.msra.mxu0 %v1651
        %1681 = vmatprep.subr.mxu0 0.0
        %1682 = vmatpush1.msra.mxu0 %v1652
        %1683 = vmatprep.subr.mxu0 0.0
        %1684 = vmatpush1.msra.mxu0 %v1653
        %1685 = vmatprep.subr.mxu0 0.0
        %1686 = vmatpush1.msra.mxu0 %v1654
        %1687 = vmatprep.subr.mxu0 0.0
        %1688 = vmatpush1.msra.mxu0 0.0
        %1689 = vmatprep.subr.mxu0 0.0
        %1690 = vmatpush1.msra.mxu0 0.0
        %1691 = vmatprep.subr.mxu0 0.0
        %1692 = vmatpush1.msra.mxu0 0.0
        %1693 = vmatprep.subr.mxu0 0.0
        %1694 = vmatpush1.msra.mxu0 0.0
        %1695 = vmatprep.subr.mxu0 0.0
        %1696 = vmatpush1.msra.mxu0 0.0
        %1697 = vmatprep.subr.mxu0 0.0
        %1698 = vmatpush1.msra.mxu0 0.0
        %1699 = vmatprep.subr.mxu0 0.0
        %1700 = vmatpush1.msra.mxu0 0.0
        %1701 = vmatprep.subr.mxu0 0.0
        %1702 = vmatpush1.msra.mxu0 0.0
        %1703 = vmatprep.subr.mxu0 0.0
        %1704 = vmatpush1.msra.mxu0 0.0
        %1705 = vmatprep.subr.mxu0 0.0
        %1706 = vmatpush1.msra.mxu0 0.0
        %1707 = vmatprep.subr.mxu0 0.0
        %1708 = vmatpush1.msra.mxu0 0.0
        %1709 = vmatprep.subr.mxu0 0.0
        %1710 = vmatpush1.msra.mxu0 0.0
        %1711 = vmatprep.subr.mxu0 0.0
        %1712 = vmatpush1.msra.mxu0 0.0
        %1713 = vmatprep.subr.mxu0 0.0
        %1714 = vmatpush1.msra.mxu0 0.0
        %1715 = vmatprep.subr.mxu0 0.0
        %1716 = vmatpush1.msra.mxu0 0.0
        %1717 = vmatprep.subr.mxu0 0.0
        %1718 = vmatpush1.msra.mxu0 0.0
        %1719 = vmatprep.mubr.f32.mxu0 0.0
        %1720 = vmatmul.mubr.f32.gmra.mrb[0].mxu0 %v1286
        %v1721 = vpop.f32.mrb[0].mxu0
        %v1722 = vadd.f32 0.0, %v1721
        %v1723 = vpop.f32.mrb[0].mxu0
        %1724 = vdwg.mxu0
        %v1725 = vadd.f32 %v1637, %v1722
        %s1726 = scalar_lea.vmem [#allocation11], 640
        %v1727 = vld [vmem:[%s1726] sm:$0xff]
        %v1728 = vld [vmem:[%s1726 + $0x8] sm:$0xff]
        %v1729 = vld [vmem:[%s1726 + $0x10] sm:$0xff]
        %v1730 = vld [vmem:[%s1726 + $0x18] sm:$0xff]
        %v1731 = vld [vmem:[%s1726 + $0x20] sm:$0xff]
        %v1732 = vld [vmem:[%s1726 + $0x28] sm:$0xff]
        %v1733 = vld [vmem:[%s1726 + $0x30] sm:$0xff]
        %v1734 = vld [vmem:[%s1726 + $0x38] sm:$0xff]
        %v1735 = vld [vmem:[%s1726 + $0x40] sm:$0xff]
        %v1736 = vld [vmem:[%s1726 + $0x48] sm:$0xff]
        %v1737 = vld [vmem:[%s1726 + $0x50] sm:$0xff]
        %v1738 = vld [vmem:[%s1726 + $0x58] sm:$0xff]
        %v1739 = vld [vmem:[%s1726 + $0x60] sm:$0xff]
        %v1740 = vld [vmem:[%s1726 + $0x68] sm:$0xff]
        %v1741 = vld [vmem:[%s1726 + $0x70] sm:$0xff]
        %v1742 = vld [vmem:[%s1726 + $0x78] sm:$0xff]
        %1743 = vmatprep.subr.mxu0 0.0
        %1744 = vmatpush1.msra.mxu0 %v1727
        %1745 = vmatprep.subr.mxu0 0.0
        %1746 = vmatpush1.msra.mxu0 %v1728
        %1747 = vmatprep.subr.mxu0 0.0
        %1748 = vmatpush1.msra.mxu0 %v1729
        %1749 = vmatprep.subr.mxu0 0.0
        %1750 = vmatpush1.msra.mxu0 %v1730
        %1751 = vmatprep.subr.mxu0 0.0
        %1752 = vmatpush1.msra.mxu0 %v1731
        %1753 = vmatprep.subr.mxu0 0.0
        %1754 = vmatpush1.msra.mxu0 %v1732
        %1755 = vmatprep.subr.mxu0 0.0
        %1756 = vmatpush1.msra.mxu0 %v1733
        %1757 = vmatprep.subr.mxu0 0.0
        %1758 = vmatpush1.msra.mxu0 %v1734
        %1759 = vmatprep.subr.mxu0 0.0
        %1760 = vmatpush1.msra.mxu0 %v1735
        %1761 = vmatprep.subr.mxu0 0.0
        %1762 = vmatpush1.msra.mxu0 %v1736
        %1763 = vmatprep.subr.mxu0 0.0
        %1764 = vmatpush1.msra.mxu0 %v1737
        %1765 = vmatprep.subr.mxu0 0.0
        %1766 = vmatpush1.msra.mxu0 %v1738
        %1767 = vmatprep.subr.mxu0 0.0
        %1768 = vmatpush1.msra.mxu0 %v1739
        %1769 = vmatprep.subr.mxu0 0.0
        %1770 = vmatpush1.msra.mxu0 %v1740
        %1771 = vmatprep.subr.mxu0 0.0
        %1772 = vmatpush1.msra.mxu0 %v1741
        %1773 = vmatprep.subr.mxu0 0.0
        %1774 = vmatpush1.msra.mxu0 %v1742
        %1775 = vmatprep.subr.mxu0 0.0
        %1776 = vmatpush1.msra.mxu0 0.0
        %1777 = vmatprep.subr.mxu0 0.0
        %1778 = vmatpush1.msra.mxu0 0.0
        %1779 = vmatprep.subr.mxu0 0.0
        %1780 = vmatpush1.msra.mxu0 0.0
        %1781 = vmatprep.subr.mxu0 0.0
        %1782 = vmatpush1.msra.mxu0 0.0
        %1783 = vmatprep.subr.mxu0 0.0
        %1784 = vmatpush1.msra.mxu0 0.0
        %1785 = vmatprep.subr.mxu0 0.0
        %1786 = vmatpush1.msra.mxu0 0.0
        %1787 = vmatprep.subr.mxu0 0.0
        %1788 = vmatpush1.msra.mxu0 0.0
        %1789 = vmatprep.subr.mxu0 0.0
        %1790 = vmatpush1.msra.mxu0 0.0
        %1791 = vmatprep.subr.mxu0 0.0
        %1792 = vmatpush1.msra.mxu0 0.0
        %1793 = vmatprep.subr.mxu0 0.0
        %1794 = vmatpush1.msra.mxu0 0.0
        %1795 = vmatprep.subr.mxu0 0.0
        %1796 = vmatpush1.msra.mxu0 0.0
        %1797 = vmatprep.subr.mxu0 0.0
        %1798 = vmatpush1.msra.mxu0 0.0
        %1799 = vmatprep.subr.mxu0 0.0
        %1800 = vmatpush1.msra.mxu0 0.0
        %1801 = vmatprep.subr.mxu0 0.0
        %1802 = vmatpush1.msra.mxu0 0.0
        %1803 = vmatprep.subr.mxu0 0.0
        %1804 = vmatpush1.msra.mxu0 0.0
        %1805 = vmatprep.subr.mxu0 0.0
        %1806 = vmatpush1.msra.mxu0 0.0
        %1807 = vmatprep.mubr.f32.mxu0 0.0
        %1808 = vmatmul.mubr.f32.gmra.mrb[0].mxu0 %v1288
        %v1809 = vpop.f32.mrb[0].mxu0
        %v1810 = vadd.f32 0.0, %v1809
        %v1811 = vpop.f32.mrb[0].mxu0
        %1812 = vdwg.mxu0
        %v1813 = vadd.f32 %v1725, %v1810
        %v1814 = vld [vmem:[%s6] sm:$0x1]
        %v1816 = vlaneseq
        %v1817 = vshrl.u32 %v1816, 7
        %v1818 = vsub.s32 0, %v1817
        %v1819 = vrot.slane %v1814, %v1818
        %v1821 = vadd.f32 %v1813, %v1819
        %1822 = vst [vmem:[%s366] sm:$0xff] %v1821
        %s1823 = sand.u32 %s187, 1
        %s1824 = scalar_lea.sflag [#allocation4], %s1823
        %s1825 = sand.u32 %s187, 1
        %s1826 = smul.addr %s1825, 8
        %s1827 = scalar_lea.vmem [#allocation13], %s1826
        // Predicated region
        $region73: #{tpu_custom_call.1} parent=47 // pred_check
          %p1828 = pneg %p197
        $region74: #{tpu_custom_call.1} parent=47 // pred_check_branch
          %1830 = sbr.rel (%p1828) target = $region76
        $region75: #{tpu_custom_call.1} parent=47 // pred_region
          %s1832 = ssub.s32 128, 128
          %1833 = vsyncadd %s1824, %s1832
          %s1834 = smul.addr %s27, 128
          %s1835 = scalar_lea.hbm %s7, %s1834
          %s1837 = sshll.u32 %s1827, 4
          %s1838 = int_to_ptr.vmem [resolvable:$true] %s1837
          %1840 = dma.vmem_to_hbm [thread:$0]  %s1838, 128, %s1835, %s1824
        $region76: #{tpu_custom_call.1} parent=47 // pred_fallthru
          _
      $region48: #{tpu_custom_call.1} parent=5 // pred_fallthru
        _
      %p1841 = scmp.le.s32.totalorder 2, %s22
      // Predicated region
      $region77: #{tpu_custom_call.1} parent=5 // pred_check
        %p1842 = pneg %p1841
      $region78: #{tpu_custom_call.1} parent=5 // pred_check_branch
        %1844 = sbr.rel (%p1842) target = $region80
      $region79: #{tpu_custom_call.1} parent=5 // pred_region
        %s1845 = ssub.s32 %s22, 2
        // Predicated region
        $region81: #{tpu_custom_call.1} parent=79 // pred_check
          %p1846 = pneg %p203
        $region82: #{tpu_custom_call.1} parent=79 // pred_check_branch
          %1848 = sbr.rel (%p1846) target = $region84
        $region83: #{tpu_custom_call.1} parent=79 // pred_region
          %s1849 = sand.u32 %s188, 1
          %s1850 = scalar_lea.sflag [#allocation4], %s1849
          %s1851 = sand.u32 %s188, 1
          %s1852 = smul.addr %s1851, 8
          %s1853 = scalar_lea.vmem [#allocation13], %s1852
          %1854 = dma.done %s1850, 128
        $region84: #{tpu_custom_call.1} parent=79 // pred_fallthru
          _
      $region80: #{tpu_custom_call.1} parent=5 // pred_fallthru
        _
    $region6: #{tpu_custom_call.1} parent=1 // loop_footer
      %s26 = sadd.s32 1, %s22
    $region7: #{tpu_custom_call.1} parent=1 // loop_footer_branch
      %21 = sbr.rel target = $region3
    $region8: #{tpu_custom_call.1} parent=1 // loop_exit
      _
    %1855 = vsyncpa [#allocation3], 1
    %s1856 = scalar_lea.sflag [#allocation3], 1
    %1857 = vsyncpa %s1856, 1
    %1858 = vsyncpa [#allocation6], 1
    %1859 = vsyncpa [#allocation9], 1
    %1860 = vsyncpa [#allocation12], 1
    %1861 = vsyncpa [#allocation4], 1
    %s1862 = scalar_lea.sflag [#allocation4], 1
    %1863 = vsyncpa %s1862, 1

</llo_original>
